<compile_context>
chip_gen: v7x
topology: tpu7x:2x2x1
jax: 0.10.0
libtpu: 0.0.40
codegen_flags: <defaults>
</compile_context>

<pallas_src>
import functools
import math

import jax
import jax.numpy as jnp
from jax.experimental import pallas as pl
from jax.experimental.pallas import tpu as pltpu


def _conv_kernel(x_ref, w_ref, b_ref, o_ref, patches_ref, *,
                 kh, kw, cin, bh, wod, use_bias):
    """One grid step = one batch element x one block of `bh` output rows.

    x_ref:       (1, Hp, Wp, Cin)      zero-padded NHWC image (bf16)
    w_ref:       (Cout, kh*kw*Cin)     weight * scale, K ordered (dy, dx, c) (bf16)
    b_ref:       (Cout, 1)             bias (f32)
    o_ref:       (1, Cout, bh*wod)     channels-first output block (f32)
    patches_ref: (bh, wod, kh*kw*Cin)  VMEM scratch for the im2col patches (bf16)
    """
    r0 = pl.program_id(1) * bh          # first padded-input row of this block

    # im2col: one lane-slice store per tap.  Row shifts (dy) ride on the cheap
    # untiled H axis; the kh*kw shifted reads happen once per block here
    # instead of once per tap-matmul.
    for dy in range(kh):
        for dx in range(kw):
            tap = dy * kw + dx
            patches_ref[:, :, tap * cin:(tap + 1) * cin] = (
                x_ref[0, pl.ds(r0 + dy, bh), dx:dx + wod, :])

    k = kh * kw * cin
    patches = patches_ref[...].reshape(bh * wod, k)           # (M, K) bf16

    # Single MXU matmul: W (Cout,K) @ patches^T (K,M) -> (Cout, M),
    # bf16 operands, f32 accumulation.
    acc = jax.lax.dot_general(
        w_ref[...], patches,
        dimension_numbers=(((1,), (1,)), ((), ())),
        preferred_element_type=jnp.float32)

    if use_bias:
        acc = acc + b_ref[...]          # (Cout, 1) broadcasts along lanes
    o_ref[0] = acc.astype(o_ref.dtype)  # lane-dense (Cout, M) store


def _round_up(x, m):
    return ((x + m - 1) // m) * m


def _pick_row_block(ho, wod, k, c_out, vmem_budget=8 * 1024 * 1024):
    """Largest divisor `bh` of `ho` such that bh*wod is a multiple of 128
    (lane-dense, legal block shape) and the per-block VMEM footprint
    (im2col scratch + double-buffered output block) stays under budget.
    Falls back to the smallest lane-dense divisor, then the whole image."""
    def block_bytes(bh):
        patches = bh * _round_up(wod, 8) * _round_up(k, 128) * 2        # bf16
        out_blk = 2 * _round_up(c_out, 8) * _round_up(bh * wod, 128) * 4  # f32 x2
        return patches + out_blk

    best = None
    for bh in range(1, ho + 1):
        if ho % bh or (bh * wod) % 128:
            continue
        if best is None:
            best = bh                       # smallest lane-dense fallback
        if block_bytes(bh) <= vmem_budget:
            best = bh                       # ascending -> ends at largest fitting
    return best if best is not None else ho


def equalized_conv2d(x_nchw, weight_oihw, bias, *, stride=1, padding=0,
                     use_bias=True):
    """Forward pass of EqualizedConv2d.  x_nchw: (N, Cin, H, W) float32."""
    n, c_in, h, w = x_nchw.shape
    c_out, c_in_w, kh, kw = weight_oihw.shape
    assert c_in == c_in_w
    scale = float(math.sqrt(2.0) / math.sqrt(kh * kw * c_in))

    # NCHW -> zero-padded NHWC + bf16 cast: one fused XLA copy.
    # TODO(synk): keep activations NHWC/bf16 in the surrounding model so this
    # pass disappears entirely.
    x = jnp.transpose(x_nchw, (0, 2, 3, 1)).astype(jnp.bfloat16)
    if padding:
        x = jnp.pad(x, ((0, 0), (padding, padding), (padding, padding), (0, 0)))
    hp, wp = h + 2 * padding, w + 2 * padding
    ho_d, wo_d = hp - kh + 1, wp - kw + 1        # dense (stride-1) output size
    k = kh * kw * c_in

    # Equalized-lr scale folded into the (tiny) weight, matching the PyTorch
    # `weight * scale` op order; then (Cout, K) with K ordered (dy, dx, c).
    w_t = jnp.transpose(weight_oihw * scale, (0, 2, 3, 1)).reshape(c_out, k)
    w_t = w_t.astype(jnp.bfloat16)
    b = bias if (use_bias and bias is not None) else jnp.zeros((c_out,), jnp.float32)
    b = b.astype(jnp.float32).reshape(c_out, 1)

    bh = _pick_row_block(ho_d, wo_d, k, c_out)
    m_blk = bh * wo_d
    grid = (n, ho_d // bh)

    kernel = functools.partial(_conv_kernel, kh=kh, kw=kw, cin=c_in, bh=bh,
                               wod=wo_d, use_bias=use_bias)

    out = pl.pallas_call(
        kernel,
        out_shape=jax.ShapeDtypeStruct((n, c_out, ho_d * wo_d), jnp.float32),
        grid=grid,
        in_specs=[
            # Whole padded image per batch element; the index_map ignores the
            # row-block axis so the image is DMA'd once per batch element and
            # reused across row blocks.
            # TODO(synk): stream halo'd row windows with manual make_async_copy
            # for feature maps too large to keep resident in VMEM (v7x: 64 MiB).
            pl.BlockSpec((1, hp, wp, c_in), lambda i, r: (i, 0, 0, 0)),
            pl.BlockSpec((c_out, k), lambda i, r: (0, 0)),
            pl.BlockSpec((c_out, 1), lambda i, r: (0, 0)),
        ],
        out_specs=pl.BlockSpec((1, c_out, m_blk), lambda i, r: (i, 0, r)),
        scratch_shapes=[pltpu.VMEM((bh, wo_d, k), jnp.bfloat16)],
        compiler_params=pltpu.CompilerParams(
            dimension_semantics=("parallel", "parallel"),
            vmem_limit_bytes=32 * 1024 * 1024),
    )(x, w_t, b)

    out = out.reshape(n, c_out, ho_d, wo_d)      # already channels-first (NCHW)
    if stride > 1:
        # TODO(synk): fold the stride into the kernel (strided row window +
        # strided lane reads) instead of computing dense and subsampling.
        out = out[:, :, ::stride, ::stride]
    return out


if __name__ == "__main__":
    key = jax.random.PRNGKey(0)
    n, c_in, h, w = 2, 4, 16, 16
    c_out, ksize, stride, padding = 8, 3, 1, 1

    kx, kw_ = jax.random.split(key)
    x = jax.random.normal(kx, (n, c_in, h, w), dtype=jnp.float32)
    # nn.init.normal_ -> standard normal; bias filled with 0 (deterministic).
    weight = jax.random.normal(kw_, (c_out, c_in, ksize, ksize), dtype=jnp.float32)
    bias = jnp.zeros((c_out,), dtype=jnp.float32)

    y = equalized_conv2d(x, weight, bias, stride=stride, padding=padding,
                         use_bias=True)
    y = jax.block_until_ready(y)

    # Reference with matching numerics: XLA conv on the same bf16-rounded,
    # pre-scaled operands with f32 accumulation, then the bias in f32
    # (bf16 products are exact in f32, so only summation order differs).
    ref_scale = math.sqrt(2.0) / math.sqrt(ksize * ksize * c_in)
    ref = jax.lax.conv_general_dilated(
        x.astype(jnp.bfloat16), (weight * ref_scale).astype(jnp.bfloat16),
        (stride, stride), [(padding, padding), (padding, padding)],
        dimension_numbers=("NCHW", "OIHW", "NCHW"),
        preferred_element_type=jnp.float32)
    ref = ref + bias[None, :, None, None]

    assert y.shape == ref.shape, (y.shape, ref.shape)
    max_err = float(jnp.max(jnp.abs(y - ref)))
    assert jnp.allclose(y, ref, rtol=5e-3, atol=5e-3), max_err
    print("KERNEL_OK")
</pallas_src>

<mosaic_0001>
module attributes {stable_mosaic.version = 11 : i64} {
  func.func @_conv_kernel(%arg0: i32, %arg1: i32, %arg2: memref<1x18x18x4xbf16, #tpu.memory_space<vmem>>, %arg3: memref<8x36xbf16, #tpu.memory_space<vmem>>, %arg4: memref<8x1xf32, #tpu.memory_space<vmem>>, %arg5: memref<1x8x256xf32, #tpu.memory_space<vmem>>, %arg6: memref<16x16x36xbf16, #tpu.memory_space<vmem>>) attributes {dimension_semantics = [#tpu.dimension_semantics<parallel>, #tpu.dimension_semantics<parallel>], iteration_bounds = array<i64: 2, 1>, scalar_prefetch = 0 : i64, scratch_operands = 1 : i64, tpu.core_type = #tpu.core_type<tc>, window_params = [{transform_indices = @transform_0, window_bounds = array<i64: 1, 18, 18, 4>}, {pipeline_mode = #tpu.pipeline_mode<synchronous>, transform_indices = @transform_1, window_bounds = array<i64: 8, 36>}, {pipeline_mode = #tpu.pipeline_mode<synchronous>, transform_indices = @transform_2, window_bounds = array<i64: 8, 1>}, {transform_indices = @transform_3, window_bounds = array<i64: 1, 8, 256>}]} {
    %c16_i32 = arith.constant 16 : i32
    %0 = arith.muli %arg1, %c16_i32 : i32
    %c0_i32 = arith.constant 0 : i32
    %1 = arith.addi %0, %c0_i32 : i32
    %c0 = arith.constant 0 : index
    %2 = arith.index_cast %1 : i32 to index
    %c0_0 = arith.constant 0 : index
    %c0_1 = arith.constant 0 : index
    %3 = vector.load %arg2[%c0, %2, %c0_0, %c0_1] : memref<1x18x18x4xbf16, #tpu.memory_space<vmem>>, vector<1x16x16x4xbf16>
    %4 = vector.shape_cast %3 : vector<1x16x16x4xbf16> to vector<16x16x4xbf16>
    %c0_2 = arith.constant 0 : index
    %c0_3 = arith.constant 0 : index
    %c0_4 = arith.constant 0 : index
    %5 = vector.load %arg6[%c0_2, %c0_3, %c0_4] : memref<16x16x36xbf16, #tpu.memory_space<vmem>>, vector<16x16x4xbf16>
    tpu.vector_store %arg6[%c0_2, %c0_3, %c0_4], %4 {strides = array<i32>} : memref<16x16x36xbf16, #tpu.memory_space<vmem>>, vector<16x16x4xbf16>,
    %c0_i32_5 = arith.constant 0 : i32
    %6 = arith.addi %0, %c0_i32_5 : i32
    %c0_6 = arith.constant 0 : index
    %7 = arith.index_cast %6 : i32 to index
    %c1 = arith.constant 1 : index
    %c0_7 = arith.constant 0 : index
    %8 = vector.load %arg2[%c0_6, %7, %c1, %c0_7] : memref<1x18x18x4xbf16, #tpu.memory_space<vmem>>, vector<1x16x16x4xbf16>
    %9 = vector.shape_cast %8 : vector<1x16x16x4xbf16> to vector<16x16x4xbf16>
    %c0_8 = arith.constant 0 : index
    %c0_9 = arith.constant 0 : index
    %c4 = arith.constant 4 : index
    %10 = vector.load %arg6[%c0_8, %c0_9, %c4] : memref<16x16x36xbf16, #tpu.memory_space<vmem>>, vector<16x16x4xbf16>
    tpu.vector_store %arg6[%c0_8, %c0_9, %c4], %9 {strides = array<i32>} : memref<16x16x36xbf16, #tpu.memory_space<vmem>>, vector<16x16x4xbf16>,
    %c0_i32_10 = arith.constant 0 : i32
    %11 = arith.addi %0, %c0_i32_10 : i32
    %c0_11 = arith.constant 0 : index
    %12 = arith.index_cast %11 : i32 to index
    %c2 = arith.constant 2 : index
    %c0_12 = arith.constant 0 : index
    %13 = vector.load %arg2[%c0_11, %12, %c2, %c0_12] : memref<1x18x18x4xbf16, #tpu.memory_space<vmem>>, vector<1x16x16x4xbf16>
    %14 = vector.shape_cast %13 : vector<1x16x16x4xbf16> to vector<16x16x4xbf16>
    %c0_13 = arith.constant 0 : index
    %c0_14 = arith.constant 0 : index
    %c8 = arith.constant 8 : index
    %15 = vector.load %arg6[%c0_13, %c0_14, %c8] : memref<16x16x36xbf16, #tpu.memory_space<vmem>>, vector<16x16x4xbf16>
    tpu.vector_store %arg6[%c0_13, %c0_14, %c8], %14 {strides = array<i32>} : memref<16x16x36xbf16, #tpu.memory_space<vmem>>, vector<16x16x4xbf16>,
    %c1_i32 = arith.constant 1 : i32
    %16 = arith.addi %0, %c1_i32 : i32
    %c0_15 = arith.constant 0 : index
    %17 = arith.index_cast %16 : i32 to index
    %c0_16 = arith.constant 0 : index
    %c0_17 = arith.constant 0 : index
    %18 = vector.load %arg2[%c0_15, %17, %c0_16, %c0_17] : memref<1x18x18x4xbf16, #tpu.memory_space<vmem>>, vector<1x16x16x4xbf16>
    %19 = vector.shape_cast %18 : vector<1x16x16x4xbf16> to vector<16x16x4xbf16>
    %c0_18 = arith.constant 0 : index
    %c0_19 = arith.constant 0 : index
    %c12 = arith.constant 12 : index
    %20 = vector.load %arg6[%c0_18, %c0_19, %c12] : memref<16x16x36xbf16, #tpu.memory_space<vmem>>, vector<16x16x4xbf16>
    tpu.vector_store %arg6[%c0_18, %c0_19, %c12], %19 {strides = array<i32>} : memref<16x16x36xbf16, #tpu.memory_space<vmem>>, vector<16x16x4xbf16>,
    %c1_i32_20 = arith.constant 1 : i32
    %21 = arith.addi %0, %c1_i32_20 : i32
    %c0_21 = arith.constant 0 : index
    %22 = arith.index_cast %21 : i32 to index
    %c1_22 = arith.constant 1 : index
    %c0_23 = arith.constant 0 : index
    %23 = vector.load %arg2[%c0_21, %22, %c1_22, %c0_23] : memref<1x18x18x4xbf16, #tpu.memory_space<vmem>>, vector<1x16x16x4xbf16>
    %24 = vector.shape_cast %23 : vector<1x16x16x4xbf16> to vector<16x16x4xbf16>
    %c0_24 = arith.constant 0 : index
    %c0_25 = arith.constant 0 : index
    %c16 = arith.constant 16 : index
    %25 = vector.load %arg6[%c0_24, %c0_25, %c16] : memref<16x16x36xbf16, #tpu.memory_space<vmem>>, vector<16x16x4xbf16>
    tpu.vector_store %arg6[%c0_24, %c0_25, %c16], %24 {strides = array<i32>} : memref<16x16x36xbf16, #tpu.memory_space<vmem>>, vector<16x16x4xbf16>,
    %c1_i32_26 = arith.constant 1 : i32
    %26 = arith.addi %0, %c1_i32_26 : i32
    %c0_27 = arith.constant 0 : index
    %27 = arith.index_cast %26 : i32 to index
    %c2_28 = arith.constant 2 : index
    %c0_29 = arith.constant 0 : index
    %28 = vector.load %arg2[%c0_27, %27, %c2_28, %c0_29] : memref<1x18x18x4xbf16, #tpu.memory_space<vmem>>, vector<1x16x16x4xbf16>
    %29 = vector.shape_cast %28 : vector<1x16x16x4xbf16> to vector<16x16x4xbf16>
    %c0_30 = arith.constant 0 : index
    %c0_31 = arith.constant 0 : index
    %c20 = arith.constant 20 : index
    %30 = vector.load %arg6[%c0_30, %c0_31, %c20] : memref<16x16x36xbf16, #tpu.memory_space<vmem>>, vector<16x16x4xbf16>
    tpu.vector_store %arg6[%c0_30, %c0_31, %c20], %29 {strides = array<i32>} : memref<16x16x36xbf16, #tpu.memory_space<vmem>>, vector<16x16x4xbf16>,
    %c2_i32 = arith.constant 2 : i32
    %31 = arith.addi %0, %c2_i32 : i32
    %c0_32 = arith.constant 0 : index
    %32 = arith.index_cast %31 : i32 to index
    %c0_33 = arith.constant 0 : index
    %c0_34 = arith.constant 0 : index
    %33 = vector.load %arg2[%c0_32, %32, %c0_33, %c0_34] : memref<1x18x18x4xbf16, #tpu.memory_space<vmem>>, vector<1x16x16x4xbf16>
    %34 = vector.shape_cast %33 : vector<1x16x16x4xbf16> to vector<16x16x4xbf16>
    %c0_35 = arith.constant 0 : index
    %c0_36 = arith.constant 0 : index
    %c24 = arith.constant 24 : index
    %35 = vector.load %arg6[%c0_35, %c0_36, %c24] : memref<16x16x36xbf16, #tpu.memory_space<vmem>>, vector<16x16x4xbf16>
    tpu.vector_store %arg6[%c0_35, %c0_36, %c24], %34 {strides = array<i32>} : memref<16x16x36xbf16, #tpu.memory_space<vmem>>, vector<16x16x4xbf16>,
    %c2_i32_37 = arith.constant 2 : i32
    %36 = arith.addi %0, %c2_i32_37 : i32
    %c0_38 = arith.constant 0 : index
    %37 = arith.index_cast %36 : i32 to index
    %c1_39 = arith.constant 1 : index
    %c0_40 = arith.constant 0 : index
    %38 = vector.load %arg2[%c0_38, %37, %c1_39, %c0_40] : memref<1x18x18x4xbf16, #tpu.memory_space<vmem>>, vector<1x16x16x4xbf16>
    %39 = vector.shape_cast %38 : vector<1x16x16x4xbf16> to vector<16x16x4xbf16>
    %c0_41 = arith.constant 0 : index
    %c0_42 = arith.constant 0 : index
    %c28 = arith.constant 28 : index
    %40 = vector.load %arg6[%c0_41, %c0_42, %c28] : memref<16x16x36xbf16, #tpu.memory_space<vmem>>, vector<16x16x4xbf16>
    tpu.vector_store %arg6[%c0_41, %c0_42, %c28], %39 {strides = array<i32>} : memref<16x16x36xbf16, #tpu.memory_space<vmem>>, vector<16x16x4xbf16>,
    %c2_i32_43 = arith.constant 2 : i32
    %41 = arith.addi %0, %c2_i32_43 : i32
    %c0_44 = arith.constant 0 : index
    %42 = arith.index_cast %41 : i32 to index
    %c2_45 = arith.constant 2 : index
    %c0_46 = arith.constant 0 : index
    %43 = vector.load %arg2[%c0_44, %42, %c2_45, %c0_46] : memref<1x18x18x4xbf16, #tpu.memory_space<vmem>>, vector<1x16x16x4xbf16>
    %44 = vector.shape_cast %43 : vector<1x16x16x4xbf16> to vector<16x16x4xbf16>
    %c0_47 = arith.constant 0 : index
    %c0_48 = arith.constant 0 : index
    %c32 = arith.constant 32 : index
    %45 = vector.load %arg6[%c0_47, %c0_48, %c32] : memref<16x16x36xbf16, #tpu.memory_space<vmem>>, vector<16x16x4xbf16>
    tpu.vector_store %arg6[%c0_47, %c0_48, %c32], %44 {strides = array<i32>} : memref<16x16x36xbf16, #tpu.memory_space<vmem>>, vector<16x16x4xbf16>,
    %c0_49 = arith.constant 0 : index
    %c0_50 = arith.constant 0 : index
    %c0_51 = arith.constant 0 : index
    %46 = vector.load %arg6[%c0_49, %c0_50, %c0_51] : memref<16x16x36xbf16, #tpu.memory_space<vmem>>, vector<16x16x36xbf16>
    %47 = vector.shape_cast %46 : vector<16x16x36xbf16> to vector<256x36xbf16>
    %c0_52 = arith.constant 0 : index
    %c0_53 = arith.constant 0 : index
    %48 = vector.load %arg3[%c0_52, %c0_53] : memref<8x36xbf16, #tpu.memory_space<vmem>>, vector<8x36xbf16>
    %cst = arith.constant dense<0.000000e+00> : vector<8x256xf32>
    %49 = tpu.matmul %48, %47, %cst {dimension_numbers = #tpu.dot_dimension_numbers<[1], [1], [0], [0], [0, 0, 1, 0], [], []>} : vector<8x36xbf16>, vector<256x36xbf16>, vector<8x256xf32> -> vector<8x256xf32>
    %c0_54 = arith.constant 0 : index
    %c0_55 = arith.constant 0 : index
    %50 = vector.load %arg4[%c0_54, %c0_55] : memref<8x1xf32, #tpu.memory_space<vmem>>, vector<8x1xf32>
    %51 = vector.broadcast %50 : vector<8x1xf32> to vector<8x256xf32>
    %52 = arith.addf %49, %51 : vector<8x256xf32>
    %c0_56 = arith.constant 0 : index
    %c0_57 = arith.constant 0 : index
    %c0_58 = arith.constant 0 : index
    %53 = vector.load %arg5[%c0_56, %c0_57, %c0_58] : memref<1x8x256xf32, #tpu.memory_space<vmem>>, vector<1x8x256xf32>
    %54 = vector.shape_cast %53 : vector<1x8x256xf32> to vector<8x256xf32>
    %55 = vector.shape_cast %52 : vector<8x256xf32> to vector<1x8x256xf32>
    tpu.vector_store %arg5[%c0_56, %c0_57, %c0_58], %55 {strides = array<i32>} : memref<1x8x256xf32, #tpu.memory_space<vmem>>, vector<1x8x256xf32>,
    return
  }
  func.func @transform_0(%arg0: i32, %arg1: i32) -> (i32, i32, i32, i32) {
    %c0_i32 = arith.constant 0 : i32
    %c0_i32_0 = arith.constant 0 : i32
    %c0_i32_1 = arith.constant 0 : i32
    %c0_i32_2 = arith.constant 0 : i32
    return %arg0, %c0_i32, %c0_i32_0, %c0_i32_1 : i32, i32, i32, i32
  }
  func.func @transform_1(%arg0: i32, %arg1: i32) -> (i32, i32) {
    %c0_i32 = arith.constant 0 : i32
    %c0_i32_0 = arith.constant 0 : i32
    %c0_i32_1 = arith.constant 0 : i32
    return %c0_i32, %c0_i32_0 : i32, i32
  }
  func.func @transform_2(%arg0: i32, %arg1: i32) -> (i32, i32) {
    %c0_i32 = arith.constant 0 : i32
    %c0_i32_0 = arith.constant 0 : i32
    %c0_i32_1 = arith.constant 0 : i32
    return %c0_i32, %c0_i32_0 : i32, i32
  }
  func.func @transform_3(%arg0: i32, %arg1: i32) -> (i32, i32, i32) {
    %c0_i32 = arith.constant 0 : i32
    %c0_i32_0 = arith.constant 0 : i32
    return %arg0, %c0_i32, %arg1 : i32, i32, i32
  }
}

</mosaic_0001>

<llo_original>
// kernel: tpu_custom_call.1
$region0: #{tpu_custom_call.1}
  #allocation0 [shape = 'u32[]', space=smem, size = 0x4, offset = 0x4, fixed_abs, tag = 'smem constant byte address 0x4 - core index']
  #allocation1 [shape = 'u32[144,128]{1,0:T(1,128)}', space=vmem, size = 0x12000, scoped, tag = 'internal scratch']
  #allocation2 [shape = 'bf16[16,16,36]{2,1,0:T(16,128)(2,1)}', space=vmem, size = 0x10000, scoped, tag = 'scratch operand']
  %s0 = inlined_call_operand.vmem [shape: bf16[2,18,18,4], index: 0, kind: input, shape index: {}]
  %s1 = inlined_call_operand.vmem [shape: bf16[8,36], index: 1, kind: input, shape index: {}]
  %s2 = inlined_call_operand.vmem [shape: f32[8,1], index: 2, kind: input, shape index: {}]
  %s3 = inlined_call_operand.hbm [shape: f32[2,8,256], index: 3, kind: output, shape index: {}]
  %s4 = sld [smem:[#allocation0]]
  $region45: #{tpu_custom_call.1} parent=0
    _
  %s6 = ssub.s32 1, %s4
  %s7 = scalar_select 0, %s6, %s4
  $region1: #{tpu_custom_call.1} parent=0
    #allocation3 [shape = 'u8[16384]{0}', space=vmem, size = 0x4000, scoped, tag = 'output window, operand 0']
    #allocation4 [shape = 's32[2]{0}', space=sflag, size = 0x8, scoped, tag = 'scoped memory for tpu_custom_call.1']
    %8 = vsyncpa [#allocation4], 0
    %s9 = scalar_lea.sflag [#allocation4], 1
    %10 = vsyncpa %s9, 0
    loop: start=0, step=1, limit=4
    $region2: #{tpu_custom_call.1} parent=1 // loop_pre_header
      _
    $region3: #{tpu_custom_call.1} parent=1 // loop_header
      %s12 = sphi 0, %s16
      %p13 = scmp.ge.s32.totalorder %s12, 4
      %s19 = sphi 0, %s31
      %s20 = sphi 0, %s27
      %s21 = sphi 0, %s19
      %s22 = sphi 0, %s20
      %s23 = sphi 0, %s21
      %s24 = sphi 0, %s22
      %s34 = sphi 0, %s36
      %s37 = sphi 0, %s34
      %s38 = sphi 0, %s37
      %s54 = sphi 0, %s38
      %s58 = sphi 0, %s58
      %s60 = sphi 0, %s58
      %s61 = sphi 0, %s60
      %s75 = sphi 0, %s61
      %s79 = sphi 0, %s79
      %s81 = sphi 0, %s79
      %s82 = sphi 0, %s81
      %s96 = sphi 0, %s82
      %s104 = sphi 0, %s106
      %s107 = sphi 0, %s104
      %s108 = sphi 0, %s107
      %s124 = sphi 0, %s108
    $region4: #{tpu_custom_call.1} parent=1 // loop_header_branch
      %15 = sbr.rel (%p13) target = $region8
    $region5: #{tpu_custom_call.1} parent=1 // loop_body
      %s17 = ssub.s32 %s12, 1
      %s18 = ssub.s32 %s12, 2
      %s25 = sadd.s32 1, %s20
      %p26 = scmp.ge.s32.totalorder %s25, 1
      %s27 = scalar_select %p26, 0, %s25
      %s28 = sadd.s32 1, %s19
      %s29 = scalar_select %p26, %s28, %s19
      %p30 = scmp.ge.s32.totalorder %s29, 2
      %s31 = scalar_select %p30, 0, %s29
      %s32 = ssub.s32 %s19, %s31
      %p33 = scmp.eq.s32.totalorder %s32, 0
      %s35 = sadd.s32 %s34, 1
      %s36 = scalar_select %p33, %s34, %s35
      %p39 = pneg %p33
      %p40 = scmp.eq.s32.totalorder %s12, 1
      %p41 = por %p39, %p40
      %p42 = scmp.ne.s32.totalorder %s34, %s37
      %p43 = scmp.eq.s32.totalorder %s12, 0
      %p44 = por %p42, %p43
      %p45 = scmp.ne.s32.totalorder %s34, %s37
      %p46 = scmp.eq.s32.totalorder %s17, 1
      %p47 = por %p45, %p46
      %p48 = scmp.ne.s32.totalorder %s37, %s38
      %p49 = scmp.eq.s32.totalorder %s17, 0
      %p50 = por %p48, %p49
      %p51 = scmp.ne.s32.totalorder %s37, %s38
      %p52 = scmp.eq.s32.totalorder %s18, 1
      %p53 = por %p51, %p52
      %p55 = scmp.ne.s32.totalorder %s38, %s54
      %p56 = scmp.eq.s32.totalorder %s18, 0
      %p57 = por %p55, %p56
      %s59 = sadd.s32 %s58, 1
      %p62 = scmp.eq.s32.totalorder %s12, 1
      %p63 = scmp.ne.s32.totalorder %s58, %s60
      %p64 = scmp.eq.s32.totalorder %s12, 0
      %p65 = por %p63, %p64
      %p66 = scmp.ne.s32.totalorder %s58, %s60
      %p67 = scmp.eq.s32.totalorder %s17, 1
      %p68 = por %p66, %p67
      %p69 = scmp.ne.s32.totalorder %s60, %s61
      %p70 = scmp.eq.s32.totalorder %s17, 0
      %p71 = por %p69, %p70
      %p72 = scmp.ne.s32.totalorder %s60, %s61
      %p73 = scmp.eq.s32.totalorder %s18, 1
      %p74 = por %p72, %p73
      %p76 = scmp.ne.s32.totalorder %s61, %s75
      %p77 = scmp.eq.s32.totalorder %s18, 0
      %p78 = por %p76, %p77
      %s80 = sadd.s32 %s79, 1
      %p83 = scmp.eq.s32.totalorder %s12, 1
      %p84 = scmp.ne.s32.totalorder %s79, %s81
      %p85 = scmp.eq.s32.totalorder %s12, 0
      %p86 = por %p84, %p85
      %p87 = scmp.ne.s32.totalorder %s79, %s81
      %p88 = scmp.eq.s32.totalorder %s17, 1
      %p89 = por %p87, %p88
      %p90 = scmp.ne.s32.totalorder %s81, %s82
      %p91 = scmp.eq.s32.totalorder %s17, 0
      %p92 = por %p90, %p91
      %p93 = scmp.ne.s32.totalorder %s81, %s82
      %p94 = scmp.eq.s32.totalorder %s18, 1
      %p95 = por %p93, %p94
      %p97 = scmp.ne.s32.totalorder %s82, %s96
      %p98 = scmp.eq.s32.totalorder %s18, 0
      %p99 = por %p97, %p98
      %s100 = ssub.s32 %s19, %s31
      %s101 = ssub.s32 %s20, %s27
      %s102 = sor.u32 %s100, %s101
      %p103 = scmp.eq.s32.totalorder %s102, 0
      %s105 = sadd.s32 %s104, 1
      %s106 = scalar_select %p103, %s104, %s105
      %p109 = pneg %p103
      %p110 = scmp.eq.s32.totalorder %s12, 1
      %p111 = por %p109, %p110
      %p112 = scmp.ne.s32.totalorder %s104, %s107
      %p113 = scmp.eq.s32.totalorder %s12, 0
      %p114 = por %p112, %p113
      %p115 = scmp.ne.s32.totalorder %s104, %s107
      %p116 = scmp.eq.s32.totalorder %s17, 1
      %p117 = por %p115, %p116
      %p118 = scmp.ne.s32.totalorder %s107, %s108
      %p119 = scmp.eq.s32.totalorder %s17, 0
      %p120 = por %p118, %p119
      %p121 = scmp.ne.s32.totalorder %s107, %s108
      %p122 = scmp.eq.s32.totalorder %s18, 1
      %p123 = por %p121, %p122
      %p125 = scmp.ne.s32.totalorder %s108, %s124
      %p126 = scmp.eq.s32.totalorder %s18, 0
      %p127 = por %p125, %p126
      %p128 = scmp.le.s32.totalorder 1, %s12
      %p129 = scmp.lt.s32.totalorder %s12, 3
      %p130 = pnand %p128, %p129
      %p131 = pneg %p130
      // Predicated region
      $region9: #{tpu_custom_call.1} parent=5 // pred_check
        _
      $region10: #{tpu_custom_call.1} parent=5 // pred_check_branch
        %133 = sbr.rel (%p130) target = $region12
      $region11: #{tpu_custom_call.1} parent=5 // pred_region
        %s134 = ssub.s32 %s12, 1
        // Predicated region
        $region13: #{tpu_custom_call.1} parent=11 // pred_check
          %p135 = pneg %p71
        $region14: #{tpu_custom_call.1} parent=11 // pred_check_branch
          %137 = sbr.rel (%p135) target = $region16
        $region15: #{tpu_custom_call.1} parent=11 // pred_region
          _
        $region16: #{tpu_custom_call.1} parent=11 // pred_fallthru
          _
        // Predicated region
        $region17: #{tpu_custom_call.1} parent=11 // pred_check
          %p138 = pneg %p92
        $region18: #{tpu_custom_call.1} parent=11 // pred_check_branch
          %140 = sbr.rel (%p138) target = $region20
        $region19: #{tpu_custom_call.1} parent=11 // pred_region
          _
        $region20: #{tpu_custom_call.1} parent=11 // pred_fallthru
          _
      $region12: #{tpu_custom_call.1} parent=5 // pred_fallthru
        _
      %p141 = scmp.lt.s32.totalorder %s12, 2
      // Predicated region
      $region21: #{tpu_custom_call.1} parent=5 // pred_check
        %p142 = pneg %p141
      $region22: #{tpu_custom_call.1} parent=5 // pred_check_branch
        %144 = sbr.rel (%p142) target = $region24
      $region23: #{tpu_custom_call.1} parent=5 // pred_region
        // Predicated region
        $region25: #{tpu_custom_call.1} parent=23 // pred_check
          %p145 = pneg %p44
        $region26: #{tpu_custom_call.1} parent=23 // pred_check_branch
          %147 = sbr.rel (%p145) target = $region28
        $region27: #{tpu_custom_call.1} parent=23 // pred_region
          %p148 = scmp.lt.s32.totalorder %s19, 1
          %s149 = scalar_select %p148, %s19, 1
          %s150 = smul.addr %s149, 54
          %s151 = smul.addr %s150, 4
          %s152 = scalar_lea.vmem %s0, %s151
        $region28: #{tpu_custom_call.1} parent=23 // pred_fallthru
          _
      $region24: #{tpu_custom_call.1} parent=5 // pred_fallthru
        _
      %p153 = scmp.le.s32.totalorder 1, %s12
      %p154 = scmp.lt.s32.totalorder %s12, 3
      %p155 = pnand %p153, %p154
      %p156 = pneg %p155
      // Predicated region
      $region29: #{tpu_custom_call.1} parent=5 // pred_check
        _
      $region30: #{tpu_custom_call.1} parent=5 // pred_check_branch
        %158 = sbr.rel (%p155) target = $region32
      $region31: #{tpu_custom_call.1} parent=5 // pred_region
        %s159 = ssub.s32 %s12, 1
        %p160 = scmp.lt.s32.totalorder %s21, 1
        %s161 = scalar_select %p160, %s21, 1
        %s162 = smul.addr %s161, 54
        %s163 = smul.addr %s162, 4
        %s164 = scalar_lea.vmem %s0, %s163
        %p165 = pneg %p50
        %p166 = pneg %p47
        %p167 = pneg %p71
        %p168 = pneg %p68
        %p169 = pneg %p92
        %p170 = pneg %p89
        %p171 = pneg %p120
        %p172 = pneg %p117
        %s173 = sand.u32 %s107, 1
        %s174 = scalar_lea.sflag [#allocation4], %s173
        %s175 = sand.u32 %s107, 1
        %s176 = smul.addr %s175, 16
        %s177 = scalar_lea.vmem [#allocation3], %s176
        %p178 = scmp.lt.s32.totalorder %s21, 1
        %s179 = scalar_select %p178, %s21, 1
        %s180 = smul.addr %s179, 54
        %s181 = smul.addr %s180, 4
        %s182 = scalar_lea.vmem %s0, %s181
        %s183 = smul.u32 2, %s22
        %s185 = smul.u32 %s22, 16
        %s186 = smul.u32 %s185, 3
        %s187 = smul.addr %s186, 4
        %s188 = scalar_lea.vmem %s182, %s187
        %v189 = vld [vmem:[%s188] sm:$0xf]
        %v190 = vld [vmem:[%s188 + $0x4] sm:$0xf]
        %v191 = vld [vmem:[%s188 + $0xc] sm:$0xf]
        %v192 = vld [vmem:[%s188 + $0x10] sm:$0xf]
        %v193 = vld [vmem:[%s188 + $0x18] sm:$0xf]
        %v194 = vld [vmem:[%s188 + $0x1c] sm:$0xf]
        %v195 = vld [vmem:[%s188 + $0x24] sm:$0xf]
        %v196 = vld [vmem:[%s188 + $0x28] sm:$0xf]
        %v197 = vld [vmem:[%s188 + $0x30] sm:$0xf]
        %v198 = vld [vmem:[%s188 + $0x34] sm:$0xf]
        %v199 = vld [vmem:[%s188 + $0x3c] sm:$0xf]
        %v200 = vld [vmem:[%s188 + $0x40] sm:$0xf]
        %v201 = vld [vmem:[%s188 + $0x48] sm:$0xf]
        %v202 = vld [vmem:[%s188 + $0x4c] sm:$0xf]
        %v203 = vld [vmem:[%s188 + $0x54] sm:$0xf]
        %v204 = vld [vmem:[%s188 + $0x58] sm:$0xf]
        %v205 = vld [vmem:[%s188 + $0x60] sm:$0xf]
        %v206 = vld [vmem:[%s188 + $0x64] sm:$0xf]
        %v207 = vld [vmem:[%s188 + $0x6c] sm:$0xf]
        %v208 = vld [vmem:[%s188 + $0x70] sm:$0xf]
        %v209 = vld [vmem:[%s188 + $0x78] sm:$0xf]
        %v210 = vld [vmem:[%s188 + $0x7c] sm:$0xf]
        %v211 = vld [vmem:[%s188 + $0x84] sm:$0xf]
        %v212 = vld [vmem:[%s188 + $0x88] sm:$0xf]
        %v213 = vld [vmem:[%s188 + $0x90] sm:$0xf]
        %v214 = vld [vmem:[%s188 + $0x94] sm:$0xf]
        %v215 = vld [vmem:[%s188 + $0x9c] sm:$0xf]
        %v216 = vld [vmem:[%s188 + $0xa0] sm:$0xf]
        %v217 = vld [vmem:[%s188 + $0xa8] sm:$0xf]
        %v218 = vld [vmem:[%s188 + $0xac] sm:$0xf]
        %v219 = vld [vmem:[%s188 + $0xb4] sm:$0xf]
        %v220 = vld [vmem:[%s188 + $0xb8] sm:$0xf]
        %v253 = vunpack.c.l.b16 %v189
        %v254 = vunpack.c.l.b16 %v190
        %v255 = vunpack.c.l.b16 %v191
        %v256 = vunpack.c.l.b16 %v192
        %v257 = vunpack.c.l.b16 %v193
        %v258 = vunpack.c.l.b16 %v194
        %v259 = vunpack.c.l.b16 %v195
        %v260 = vunpack.c.l.b16 %v196
        %v261 = vunpack.c.l.b16 %v197
        %v262 = vunpack.c.l.b16 %v198
        %v263 = vunpack.c.l.b16 %v199
        %v264 = vunpack.c.l.b16 %v200
        %v265 = vunpack.c.l.b16 %v201
        %v266 = vunpack.c.l.b16 %v202
        %v267 = vunpack.c.l.b16 %v203
        %v268 = vunpack.c.l.b16 %v204
        %v269 = vunpack.c.l.b16 %v205
        %v270 = vunpack.c.l.b16 %v206
        %v271 = vunpack.c.l.b16 %v207
        %v272 = vunpack.c.l.b16 %v208
        %v273 = vunpack.c.l.b16 %v209
        %v274 = vunpack.c.l.b16 %v210
        %v275 = vunpack.c.l.b16 %v211
        %v276 = vunpack.c.l.b16 %v212
        %v277 = vunpack.c.l.b16 %v213
        %v278 = vunpack.c.l.b16 %v214
        %v279 = vunpack.c.l.b16 %v215
        %v280 = vunpack.c.l.b16 %v216
        %v281 = vunpack.c.l.b16 %v217
        %v282 = vunpack.c.l.b16 %v218
        %v283 = vunpack.c.l.b16 %v219
        %v284 = vunpack.c.l.b16 %v220
        %v285 = vpack.c.b16 %v254, %v253
        %v286 = vpack.c.b16 %v256, %v255
        %v287 = vpack.c.b16 %v258, %v257
        %v288 = vpack.c.b16 %v260, %v259
        %v289 = vpack.c.b16 %v262, %v261
        %v290 = vpack.c.b16 %v264, %v263
        %v291 = vpack.c.b16 %v266, %v265
        %v292 = vpack.c.b16 %v268, %v267
        %v293 = vpack.c.b16 %v270, %v269
        %v294 = vpack.c.b16 %v272, %v271
        %v295 = vpack.c.b16 %v274, %v273
        %v296 = vpack.c.b16 %v276, %v275
        %v297 = vpack.c.b16 %v278, %v277
        %v298 = vpack.c.b16 %v280, %v279
        %v299 = vpack.c.b16 %v282, %v281
        %v300 = vpack.c.b16 %v284, %v283
        %vm317 = vcmask 31744
        %318 = vst.msk [vmem:[#allocation2] sm:$0xff] %vm317, %v285
        %319 = vst.msk [vmem:[#allocation2 + $0x8] sm:$0xff] %vm317, %v286
        %320 = vst.msk [vmem:[#allocation2 + $0x10] sm:$0xff] %vm317, %v287
        %321 = vst.msk [vmem:[#allocation2 + $0x18] sm:$0xff] %vm317, %v288
        %322 = vst.msk [vmem:[#allocation2 + $0x20] sm:$0xff] %vm317, %v289
        %323 = vst.msk [vmem:[#allocation2 + $0x28] sm:$0xff] %vm317, %v290
        %324 = vst.msk [vmem:[#allocation2 + $0x30] sm:$0xff] %vm317, %v291
        %325 = vst.msk [vmem:[#allocation2 + $0x38] sm:$0xff] %vm317, %v292
        %326 = vst.msk [vmem:[#allocation2 + $0x40] sm:$0xff] %vm317, %v293
        %327 = vst.msk [vmem:[#allocation2 + $0x48] sm:$0xff] %vm317, %v294
        %328 = vst.msk [vmem:[#allocation2 + $0x50] sm:$0xff] %vm317, %v295
        %329 = vst.msk [vmem:[#allocation2 + $0x58] sm:$0xff] %vm317, %v296
        %330 = vst.msk [vmem:[#allocation2 + $0x60] sm:$0xff] %vm317, %v297
        %331 = vst.msk [vmem:[#allocation2 + $0x68] sm:$0xff] %vm317, %v298
        %332 = vst.msk [vmem:[#allocation2 + $0x70] sm:$0xff] %vm317, %v299
        %333 = vst.msk [vmem:[#allocation2 + $0x78] sm:$0xff] %vm317, %v300
        %v334 = vld [vmem:[%s188] sm:$0xf]
        %v335 = vld [vmem:[%s188 + $0x4] sm:$0xf]
        %v336 = vld [vmem:[%s188 + $0x8] sm:$0x1]
        %v337 = vld [vmem:[%s188 + $0xc] sm:$0xf]
        %v338 = vld [vmem:[%s188 + $0x10] sm:$0xf]
        %v339 = vld [vmem:[%s188 + $0x14] sm:$0x1]
        %v340 = vld [vmem:[%s188 + $0x18] sm:$0xf]
        %v341 = vld [vmem:[%s188 + $0x1c] sm:$0xf]
        %v342 = vld [vmem:[%s188 + $0x20] sm:$0x1]
        %v343 = vld [vmem:[%s188 + $0x24] sm:$0xf]
        %v344 = vld [vmem:[%s188 + $0x28] sm:$0xf]
        %v345 = vld [vmem:[%s188 + $0x2c] sm:$0x1]
        %v346 = vld [vmem:[%s188 + $0x30] sm:$0xf]
        %v347 = vld [vmem:[%s188 + $0x34] sm:$0xf]
        %v348 = vld [vmem:[%s188 + $0x38] sm:$0x1]
        %v349 = vld [vmem:[%s188 + $0x3c] sm:$0xf]
        %v350 = vld [vmem:[%s188 + $0x40] sm:$0xf]
        %v351 = vld [vmem:[%s188 + $0x44] sm:$0x1]
        %v352 = vld [vmem:[%s188 + $0x48] sm:$0xf]
        %v353 = vld [vmem:[%s188 + $0x4c] sm:$0xf]
        %v354 = vld [vmem:[%s188 + $0x50] sm:$0x1]
        %v355 = vld [vmem:[%s188 + $0x54] sm:$0xf]
        %v356 = vld [vmem:[%s188 + $0x58] sm:$0xf]
        %v357 = vld [vmem:[%s188 + $0x5c] sm:$0x1]
        %v358 = vld [vmem:[%s188 + $0x60] sm:$0xf]
        %v359 = vld [vmem:[%s188 + $0x64] sm:$0xf]
        %v360 = vld [vmem:[%s188 + $0x68] sm:$0x1]
        %v361 = vld [vmem:[%s188 + $0x6c] sm:$0xf]
        %v362 = vld [vmem:[%s188 + $0x70] sm:$0xf]
        %v363 = vld [vmem:[%s188 + $0x74] sm:$0x1]
        %v364 = vld [vmem:[%s188 + $0x78] sm:$0xf]
        %v365 = vld [vmem:[%s188 + $0x7c] sm:$0xf]
        %v366 = vld [vmem:[%s188 + $0x80] sm:$0x1]
        %v367 = vld [vmem:[%s188 + $0x84] sm:$0xf]
        %v368 = vld [vmem:[%s188 + $0x88] sm:$0xf]
        %v369 = vld [vmem:[%s188 + $0x8c] sm:$0x1]
        %v370 = vld [vmem:[%s188 + $0x90] sm:$0xf]
        %v371 = vld [vmem:[%s188 + $0x94] sm:$0xf]
        %v372 = vld [vmem:[%s188 + $0x98] sm:$0x1]
        %v373 = vld [vmem:[%s188 + $0x9c] sm:$0xf]
        %v374 = vld [vmem:[%s188 + $0xa0] sm:$0xf]
        %v375 = vld [vmem:[%s188 + $0xa4] sm:$0x1]
        %v376 = vld [vmem:[%s188 + $0xa8] sm:$0xf]
        %v377 = vld [vmem:[%s188 + $0xac] sm:$0xf]
        %v378 = vld [vmem:[%s188 + $0xb0] sm:$0x1]
        %v379 = vld [vmem:[%s188 + $0xb4] sm:$0xf]
        %v380 = vld [vmem:[%s188 + $0xb8] sm:$0xf]
        %v381 = vld [vmem:[%s188 + $0xbc] sm:$0x1]
        %v430 = vunpack.c.l.b16 %v334
        %v431 = vunpack.c.l.b16 %v335
        %v432 = vunpack.c.l.b16 %v336
        %v433 = vunpack.c.l.b16 %v337
        %v434 = vunpack.c.l.b16 %v338
        %v435 = vunpack.c.l.b16 %v339
        %v436 = vunpack.c.l.b16 %v340
        %v437 = vunpack.c.l.b16 %v341
        %v438 = vunpack.c.l.b16 %v342
        %v439 = vunpack.c.l.b16 %v343
        %v440 = vunpack.c.l.b16 %v344
        %v441 = vunpack.c.l.b16 %v345
        %v442 = vunpack.c.l.b16 %v346
        %v443 = vunpack.c.l.b16 %v347
        %v444 = vunpack.c.l.b16 %v348
        %v445 = vunpack.c.l.b16 %v349
        %v446 = vunpack.c.l.b16 %v350
        %v447 = vunpack.c.l.b16 %v351
        %v448 = vunpack.c.l.b16 %v352
        %v449 = vunpack.c.l.b16 %v353
        %v450 = vunpack.c.l.b16 %v354
        %v451 = vunpack.c.l.b16 %v355
        %v452 = vunpack.c.l.b16 %v356
        %v453 = vunpack.c.l.b16 %v357
        %v454 = vunpack.c.l.b16 %v358
        %v455 = vunpack.c.l.b16 %v359
        %v456 = vunpack.c.l.b16 %v360
        %v457 = vunpack.c.l.b16 %v361
        %v458 = vunpack.c.l.b16 %v362
        %v459 = vunpack.c.l.b16 %v363
        %v460 = vunpack.c.l.b16 %v364
        %v461 = vunpack.c.l.b16 %v365
        %v462 = vunpack.c.l.b16 %v366
        %v463 = vunpack.c.l.b16 %v367
        %v464 = vunpack.c.l.b16 %v368
        %v465 = vunpack.c.l.b16 %v369
        %v466 = vunpack.c.l.b16 %v370
        %v467 = vunpack.c.l.b16 %v371
        %v468 = vunpack.c.l.b16 %v372
        %v469 = vunpack.c.l.b16 %v373
        %v470 = vunpack.c.l.b16 %v374
        %v471 = vunpack.c.l.b16 %v375
        %v472 = vunpack.c.l.b16 %v376
        %v473 = vunpack.c.l.b16 %v377
        %v474 = vunpack.c.l.b16 %v378
        %v475 = vunpack.c.l.b16 %v379
        %v476 = vunpack.c.l.b16 %v380
        %v477 = vunpack.c.l.b16 %v381
        %v478 = vpack.c.b16 %v431, %v430
        %v479 = vpack.c.b16 %v432, %v432
        %v480 = vpack.c.b16 %v434, %v433
        %v481 = vpack.c.b16 %v435, %v435
        %v482 = vpack.c.b16 %v437, %v436
        %v483 = vpack.c.b16 %v438, %v438
        %v484 = vpack.c.b16 %v440, %v439
        %v485 = vpack.c.b16 %v441, %v441
        %v486 = vpack.c.b16 %v443, %v442
        %v487 = vpack.c.b16 %v444, %v444
        %v488 = vpack.c.b16 %v446, %v445
        %v489 = vpack.c.b16 %v447, %v447
        %v490 = vpack.c.b16 %v449, %v448
        %v491 = vpack.c.b16 %v450, %v450
        %v492 = vpack.c.b16 %v452, %v451
        %v493 = vpack.c.b16 %v453, %v453
        %v494 = vpack.c.b16 %v455, %v454
        %v495 = vpack.c.b16 %v456, %v456
        %v496 = vpack.c.b16 %v458, %v457
        %v497 = vpack.c.b16 %v459, %v459
        %v498 = vpack.c.b16 %v461, %v460
        %v499 = vpack.c.b16 %v462, %v462
        %v500 = vpack.c.b16 %v464, %v463
        %v501 = vpack.c.b16 %v465, %v465
        %v502 = vpack.c.b16 %v467, %v466
        %v503 = vpack.c.b16 %v468, %v468
        %v504 = vpack.c.b16 %v470, %v469
        %v505 = vpack.c.b16 %v471, %v471
        %v506 = vpack.c.b16 %v473, %v472
        %v507 = vpack.c.b16 %v474, %v474
        %v508 = vpack.c.b16 %v476, %v475
        %v509 = vpack.c.b16 %v477, %v477
        %vm510 = vsmask.f32 7424
        %v512 = vshrl.u32 %v478, 16
        %v514 = vshll.u32 %v478, 16
        %v516 = vrot.slane %v514, 1
        %v517 = vor.u32 %v512, %v516
        %v519 = vshll.u32 %v479, 16
        %v521 = vrot.slane %v519, 1
        %v522 = vsel %vm510, %v517, %v521
        %v524 = vshrl.u32 %v480, 16
        %v526 = vshll.u32 %v480, 16
        %v528 = vrot.slane %v526, 1
        %v529 = vor.u32 %v524, %v528
        %v531 = vshll.u32 %v481, 16
        %v533 = vrot.slane %v531, 1
        %v534 = vsel %vm510, %v529, %v533
        %v536 = vshrl.u32 %v482, 16
        %v538 = vshll.u32 %v482, 16
        %v540 = vrot.slane %v538, 1
        %v541 = vor.u32 %v536, %v540
        %v543 = vshll.u32 %v483, 16
        %v545 = vrot.slane %v543, 1
        %v546 = vsel %vm510, %v541, %v545
        %v548 = vshrl.u32 %v484, 16
        %v550 = vshll.u32 %v484, 16
        %v552 = vrot.slane %v550, 1
        %v553 = vor.u32 %v548, %v552
        %v555 = vshll.u32 %v485, 16
        %v557 = vrot.slane %v555, 1
        %v558 = vsel %vm510, %v553, %v557
        %v560 = vshrl.u32 %v486, 16
        %v562 = vshll.u32 %v486, 16
        %v564 = vrot.slane %v562, 1
        %v565 = vor.u32 %v560, %v564
        %v567 = vshll.u32 %v487, 16
        %v569 = vrot.slane %v567, 1
        %v570 = vsel %vm510, %v565, %v569
        %v572 = vshrl.u32 %v488, 16
        %v574 = vshll.u32 %v488, 16
        %v576 = vrot.slane %v574, 1
        %v577 = vor.u32 %v572, %v576
        %v579 = vshll.u32 %v489, 16
        %v581 = vrot.slane %v579, 1
        %v582 = vsel %vm510, %v577, %v581
        %v584 = vshrl.u32 %v490, 16
        %v586 = vshll.u32 %v490, 16
        %v588 = vrot.slane %v586, 1
        %v589 = vor.u32 %v584, %v588
        %v591 = vshll.u32 %v491, 16
        %v593 = vrot.slane %v591, 1
        %v594 = vsel %vm510, %v589, %v593
        %v596 = vshrl.u32 %v492, 16
        %v598 = vshll.u32 %v492, 16
        %v600 = vrot.slane %v598, 1
        %v601 = vor.u32 %v596, %v600
        %v603 = vshll.u32 %v493, 16
        %v605 = vrot.slane %v603, 1
        %v606 = vsel %vm510, %v601, %v605
        %v608 = vshrl.u32 %v494, 16
        %v610 = vshll.u32 %v494, 16
        %v612 = vrot.slane %v610, 1
        %v613 = vor.u32 %v608, %v612
        %v615 = vshll.u32 %v495, 16
        %v617 = vrot.slane %v615, 1
        %v618 = vsel %vm510, %v613, %v617
        %v620 = vshrl.u32 %v496, 16
        %v622 = vshll.u32 %v496, 16
        %v624 = vrot.slane %v622, 1
        %v625 = vor.u32 %v620, %v624
        %v627 = vshll.u32 %v497, 16
        %v629 = vrot.slane %v627, 1
        %v630 = vsel %vm510, %v625, %v629
        %v632 = vshrl.u32 %v498, 16
        %v634 = vshll.u32 %v498, 16
        %v636 = vrot.slane %v634, 1
        %v637 = vor.u32 %v632, %v636
        %v639 = vshll.u32 %v499, 16
        %v641 = vrot.slane %v639, 1
        %v642 = vsel %vm510, %v637, %v641
        %v644 = vshrl.u32 %v500, 16
        %v646 = vshll.u32 %v500, 16
        %v648 = vrot.slane %v646, 1
        %v649 = vor.u32 %v644, %v648
        %v651 = vshll.u32 %v501, 16
        %v653 = vrot.slane %v651, 1
        %v654 = vsel %vm510, %v649, %v653
        %v656 = vshrl.u32 %v502, 16
        %v658 = vshll.u32 %v502, 16
        %v660 = vrot.slane %v658, 1
        %v661 = vor.u32 %v656, %v660
        %v663 = vshll.u32 %v503, 16
        %v665 = vrot.slane %v663, 1
        %v666 = vsel %vm510, %v661, %v665
        %v668 = vshrl.u32 %v504, 16
        %v670 = vshll.u32 %v504, 16
        %v672 = vrot.slane %v670, 1
        %v673 = vor.u32 %v668, %v672
        %v675 = vshll.u32 %v505, 16
        %v677 = vrot.slane %v675, 1
        %v678 = vsel %vm510, %v673, %v677
        %v680 = vshrl.u32 %v506, 16
        %v682 = vshll.u32 %v506, 16
        %v684 = vrot.slane %v682, 1
        %v685 = vor.u32 %v680, %v684
        %v687 = vshll.u32 %v507, 16
        %v689 = vrot.slane %v687, 1
        %v690 = vsel %vm510, %v685, %v689
        %v692 = vshrl.u32 %v508, 16
        %v694 = vshll.u32 %v508, 16
        %v696 = vrot.slane %v694, 1
        %v697 = vor.u32 %v692, %v696
        %v699 = vshll.u32 %v509, 16
        %v701 = vrot.slane %v699, 1
        %v702 = vsel %vm510, %v697, %v701
        %703 = vrot.lane.b32.xlu0 %v522, 4
        %v704 = vpop.permute.xlu0 %703
        %705 = vrot.lane.b32.xlu0 %v534, 4
        %v706 = vpop.permute.xlu0 %705
        %707 = vrot.lane.b32.xlu0 %v546, 4
        %v708 = vpop.permute.xlu0 %707
        %709 = vrot.lane.b32.xlu0 %v558, 4
        %v710 = vpop.permute.xlu0 %709
        %711 = vrot.lane.b32.xlu0 %v570, 4
        %v712 = vpop.permute.xlu0 %711
        %713 = vrot.lane.b32.xlu0 %v582, 4
        %v714 = vpop.permute.xlu0 %713
        %715 = vrot.lane.b32.xlu0 %v594, 4
        %v716 = vpop.permute.xlu0 %715
        %717 = vrot.lane.b32.xlu0 %v606, 4
        %v718 = vpop.permute.xlu0 %717
        %719 = vrot.lane.b32.xlu0 %v618, 4
        %v720 = vpop.permute.xlu0 %719
        %721 = vrot.lane.b32.xlu0 %v630, 4
        %v722 = vpop.permute.xlu0 %721
        %723 = vrot.lane.b32.xlu0 %v642, 4
        %v724 = vpop.permute.xlu0 %723
        %725 = vrot.lane.b32.xlu0 %v654, 4
        %v726 = vpop.permute.xlu0 %725
        %727 = vrot.lane.b32.xlu0 %v666, 4
        %v728 = vpop.permute.xlu0 %727
        %729 = vrot.lane.b32.xlu0 %v678, 4
        %v730 = vpop.permute.xlu0 %729
        %731 = vrot.lane.b32.xlu0 %v690, 4
        %v732 = vpop.permute.xlu0 %731
        %733 = vrot.lane.b32.xlu0 %v702, 4
        %v734 = vpop.permute.xlu0 %733
        %vm751 = vcmask 64544
        %752 = vst.msk [vmem:[#allocation2] sm:$0xff] %vm751, %v704
        %753 = vst.msk [vmem:[#allocation2 + $0x8] sm:$0xff] %vm751, %v706
        %754 = vst.msk [vmem:[#allocation2 + $0x10] sm:$0xff] %vm751, %v708
        %755 = vst.msk [vmem:[#allocation2 + $0x18] sm:$0xff] %vm751, %v710
        %756 = vst.msk [vmem:[#allocation2 + $0x20] sm:$0xff] %vm751, %v712
        %757 = vst.msk [vmem:[#allocation2 + $0x28] sm:$0xff] %vm751, %v714
        %758 = vst.msk [vmem:[#allocation2 + $0x30] sm:$0xff] %vm751, %v716
        %759 = vst.msk [vmem:[#allocation2 + $0x38] sm:$0xff] %vm751, %v718
        %760 = vst.msk [vmem:[#allocation2 + $0x40] sm:$0xff] %vm751, %v720
        %761 = vst.msk [vmem:[#allocation2 + $0x48] sm:$0xff] %vm751, %v722
        %762 = vst.msk [vmem:[#allocation2 + $0x50] sm:$0xff] %vm751, %v724
        %763 = vst.msk [vmem:[#allocation2 + $0x58] sm:$0xff] %vm751, %v726
        %764 = vst.msk [vmem:[#allocation2 + $0x60] sm:$0xff] %vm751, %v728
        %765 = vst.msk [vmem:[#allocation2 + $0x68] sm:$0xff] %vm751, %v730
        %766 = vst.msk [vmem:[#allocation2 + $0x70] sm:$0xff] %vm751, %v732
        %767 = vst.msk [vmem:[#allocation2 + $0x78] sm:$0xff] %vm751, %v734
        %v768 = vld [vmem:[%s188] sm:$0xe]
        %v769 = vld [vmem:[%s188 + $0x4] sm:$0xf]
        %v770 = vld [vmem:[%s188 + $0x8] sm:$0x1]
        %v771 = vld [vmem:[%s188 + $0xc] sm:$0xe]
        %v772 = vld [vmem:[%s188 + $0x10] sm:$0xf]
        %v773 = vld [vmem:[%s188 + $0x14] sm:$0x1]
        %v774 = vld [vmem:[%s188 + $0x18] sm:$0xe]
        %v775 = vld [vmem:[%s188 + $0x1c] sm:$0xf]
        %v776 = vld [vmem:[%s188 + $0x20] sm:$0x1]
        %v777 = vld [vmem:[%s188 + $0x24] sm:$0xe]
        %v778 = vld [vmem:[%s188 + $0x28] sm:$0xf]
        %v779 = vld [vmem:[%s188 + $0x2c] sm:$0x1]
        %v780 = vld [vmem:[%s188 + $0x30] sm:$0xe]
        %v781 = vld [vmem:[%s188 + $0x34] sm:$0xf]
        %v782 = vld [vmem:[%s188 + $0x38] sm:$0x1]
        %v783 = vld [vmem:[%s188 + $0x3c] sm:$0xe]
        %v784 = vld [vmem:[%s188 + $0x40] sm:$0xf]
        %v785 = vld [vmem:[%s188 + $0x44] sm:$0x1]
        %v786 = vld [vmem:[%s188 + $0x48] sm:$0xe]
        %v787 = vld [vmem:[%s188 + $0x4c] sm:$0xf]
        %v788 = vld [vmem:[%s188 + $0x50] sm:$0x1]
        %v789 = vld [vmem:[%s188 + $0x54] sm:$0xe]
        %v790 = vld [vmem:[%s188 + $0x58] sm:$0xf]
        %v791 = vld [vmem:[%s188 + $0x5c] sm:$0x1]
        %v792 = vld [vmem:[%s188 + $0x60] sm:$0xe]
        %v793 = vld [vmem:[%s188 + $0x64] sm:$0xf]
        %v794 = vld [vmem:[%s188 + $0x68] sm:$0x1]
        %v795 = vld [vmem:[%s188 + $0x6c] sm:$0xe]
        %v796 = vld [vmem:[%s188 + $0x70] sm:$0xf]
        %v797 = vld [vmem:[%s188 + $0x74] sm:$0x1]
        %v798 = vld [vmem:[%s188 + $0x78] sm:$0xe]
        %v799 = vld [vmem:[%s188 + $0x7c] sm:$0xf]
        %v800 = vld [vmem:[%s188 + $0x80] sm:$0x1]
        %v801 = vld [vmem:[%s188 + $0x84] sm:$0xe]
        %v802 = vld [vmem:[%s188 + $0x88] sm:$0xf]
        %v803 = vld [vmem:[%s188 + $0x8c] sm:$0x1]
        %v804 = vld [vmem:[%s188 + $0x90] sm:$0xe]
        %v805 = vld [vmem:[%s188 + $0x94] sm:$0xf]
        %v806 = vld [vmem:[%s188 + $0x98] sm:$0x1]
        %v807 = vld [vmem:[%s188 + $0x9c] sm:$0xe]
        %v808 = vld [vmem:[%s188 + $0xa0] sm:$0xf]
        %v809 = vld [vmem:[%s188 + $0xa4] sm:$0x1]
        %v810 = vld [vmem:[%s188 + $0xa8] sm:$0xe]
        %v811 = vld [vmem:[%s188 + $0xac] sm:$0xf]
        %v812 = vld [vmem:[%s188 + $0xb0] sm:$0x1]
        %v813 = vld [vmem:[%s188 + $0xb4] sm:$0xe]
        %v814 = vld [vmem:[%s188 + $0xb8] sm:$0xf]
        %v815 = vld [vmem:[%s188 + $0xbc] sm:$0x1]
        %v864 = vunpack.c.l.b16 %v768
        %v865 = vunpack.c.l.b16 %v769
        %v866 = vunpack.c.l.b16 %v770
        %v867 = vunpack.c.l.b16 %v771
        %v868 = vunpack.c.l.b16 %v772
        %v869 = vunpack.c.l.b16 %v773
        %v870 = vunpack.c.l.b16 %v774
        %v871 = vunpack.c.l.b16 %v775
        %v872 = vunpack.c.l.b16 %v776
        %v873 = vunpack.c.l.b16 %v777
        %v874 = vunpack.c.l.b16 %v778
        %v875 = vunpack.c.l.b16 %v779
        %v876 = vunpack.c.l.b16 %v780
        %v877 = vunpack.c.l.b16 %v781
        %v878 = vunpack.c.l.b16 %v782
        %v879 = vunpack.c.l.b16 %v783
        %v880 = vunpack.c.l.b16 %v784
        %v881 = vunpack.c.l.b16 %v785
        %v882 = vunpack.c.l.b16 %v786
        %v883 = vunpack.c.l.b16 %v787
        %v884 = vunpack.c.l.b16 %v788
        %v885 = vunpack.c.l.b16 %v789
        %v886 = vunpack.c.l.b16 %v790
        %v887 = vunpack.c.l.b16 %v791
        %v888 = vunpack.c.l.b16 %v792
        %v889 = vunpack.c.l.b16 %v793
        %v890 = vunpack.c.l.b16 %v794
        %v891 = vunpack.c.l.b16 %v795
        %v892 = vunpack.c.l.b16 %v796
        %v893 = vunpack.c.l.b16 %v797
        %v894 = vunpack.c.l.b16 %v798
        %v895 = vunpack.c.l.b16 %v799
        %v896 = vunpack.c.l.b16 %v800
        %v897 = vunpack.c.l.b16 %v801
        %v898 = vunpack.c.l.b16 %v802
        %v899 = vunpack.c.l.b16 %v803
        %v900 = vunpack.c.l.b16 %v804
        %v901 = vunpack.c.l.b16 %v805
        %v902 = vunpack.c.l.b16 %v806
        %v903 = vunpack.c.l.b16 %v807
        %v904 = vunpack.c.l.b16 %v808
        %v905 = vunpack.c.l.b16 %v809
        %v906 = vunpack.c.l.b16 %v810
        %v907 = vunpack.c.l.b16 %v811
        %v908 = vunpack.c.l.b16 %v812
        %v909 = vunpack.c.l.b16 %v813
        %v910 = vunpack.c.l.b16 %v814
        %v911 = vunpack.c.l.b16 %v815
        %v912 = vpack.c.b16 %v865, %v864
        %v913 = vpack.c.b16 %v866, %v866
        %v914 = vpack.c.b16 %v868, %v867
        %v915 = vpack.c.b16 %v869, %v869
        %v916 = vpack.c.b16 %v871, %v870
        %v917 = vpack.c.b16 %v872, %v872
        %v918 = vpack.c.b16 %v874, %v873
        %v919 = vpack.c.b16 %v875, %v875
        %v920 = vpack.c.b16 %v877, %v876
        %v921 = vpack.c.b16 %v878, %v878
        %v922 = vpack.c.b16 %v880, %v879
        %v923 = vpack.c.b16 %v881, %v881
        %v924 = vpack.c.b16 %v883, %v882
        %v925 = vpack.c.b16 %v884, %v884
        %v926 = vpack.c.b16 %v886, %v885
        %v927 = vpack.c.b16 %v887, %v887
        %v928 = vpack.c.b16 %v889, %v888
        %v929 = vpack.c.b16 %v890, %v890
        %v930 = vpack.c.b16 %v892, %v891
        %v931 = vpack.c.b16 %v893, %v893
        %v932 = vpack.c.b16 %v895, %v894
        %v933 = vpack.c.b16 %v896, %v896
        %v934 = vpack.c.b16 %v898, %v897
        %v935 = vpack.c.b16 %v899, %v899
        %v936 = vpack.c.b16 %v901, %v900
        %v937 = vpack.c.b16 %v902, %v902
        %v938 = vpack.c.b16 %v904, %v903
        %v939 = vpack.c.b16 %v905, %v905
        %v940 = vpack.c.b16 %v907, %v906
        %v941 = vpack.c.b16 %v908, %v908
        %v942 = vpack.c.b16 %v910, %v909
        %v943 = vpack.c.b16 %v911, %v911
        %vm944 = vcmask 1046528
        %v945 = vrot.slane %v912, 1
        %v946 = vrot.slane %v913, 1
        %v947 = vsel %vm944, %v945, %v946
        %v948 = vrot.slane %v914, 1
        %v949 = vrot.slane %v915, 1
        %v950 = vsel %vm944, %v948, %v949
        %v951 = vrot.slane %v916, 1
        %v952 = vrot.slane %v917, 1
        %v953 = vsel %vm944, %v951, %v952
        %v954 = vrot.slane %v918, 1
        %v955 = vrot.slane %v919, 1
        %v956 = vsel %vm944, %v954, %v955
        %v957 = vrot.slane %v920, 1
        %v958 = vrot.slane %v921, 1
        %v959 = vsel %vm944, %v957, %v958
        %v960 = vrot.slane %v922, 1
        %v961 = vrot.slane %v923, 1
        %v962 = vsel %vm944, %v960, %v961
        %v963 = vrot.slane %v924, 1
        %v964 = vrot.slane %v925, 1
        %v965 = vsel %vm944, %v963, %v964
        %v966 = vrot.slane %v926, 1
        %v967 = vrot.slane %v927, 1
        %v968 = vsel %vm944, %v966, %v967
        %v969 = vrot.slane %v928, 1
        %v970 = vrot.slane %v929, 1
        %v971 = vsel %vm944, %v969, %v970
        %v972 = vrot.slane %v930, 1
        %v973 = vrot.slane %v931, 1
        %v974 = vsel %vm944, %v972, %v973
        %v975 = vrot.slane %v932, 1
        %v976 = vrot.slane %v933, 1
        %v977 = vsel %vm944, %v975, %v976
        %v978 = vrot.slane %v934, 1
        %v979 = vrot.slane %v935, 1
        %v980 = vsel %vm944, %v978, %v979
        %v981 = vrot.slane %v936, 1
        %v982 = vrot.slane %v937, 1
        %v983 = vsel %vm944, %v981, %v982
        %v984 = vrot.slane %v938, 1
        %v985 = vrot.slane %v939, 1
        %v986 = vsel %vm944, %v984, %v985
        %v987 = vrot.slane %v940, 1
        %v988 = vrot.slane %v941, 1
        %v989 = vsel %vm944, %v987, %v988
        %v990 = vrot.slane %v942, 1
        %v991 = vrot.slane %v943, 1
        %v992 = vsel %vm944, %v990, %v991
        %993 = vrot.lane.b32.xlu0 %v947, 8
        %v994 = vpop.permute.xlu0 %993
        %995 = vrot.lane.b32.xlu0 %v950, 8
        %v996 = vpop.permute.xlu0 %995
        %997 = vrot.lane.b32.xlu0 %v953, 8
        %v998 = vpop.permute.xlu0 %997
        %999 = vrot.lane.b32.xlu0 %v956, 8
        %v1000 = vpop.permute.xlu0 %999
        %1001 = vrot.lane.b32.xlu0 %v959, 8
        %v1002 = vpop.permute.xlu0 %1001
        %1003 = vrot.lane.b32.xlu0 %v962, 8
        %v1004 = vpop.permute.xlu0 %1003
        %1005 = vrot.lane.b32.xlu0 %v965, 8
        %v1006 = vpop.permute.xlu0 %1005
        %1007 = vrot.lane.b32.xlu0 %v968, 8
        %v1008 = vpop.permute.xlu0 %1007
        %1009 = vrot.lane.b32.xlu0 %v971, 8
        %v1010 = vpop.permute.xlu0 %1009
        %1011 = vrot.lane.b32.xlu0 %v974, 8
        %v1012 = vpop.permute.xlu0 %1011
        %1013 = vrot.lane.b32.xlu0 %v977, 8
        %v1014 = vpop.permute.xlu0 %1013
        %1015 = vrot.lane.b32.xlu0 %v980, 8
        %v1016 = vpop.permute.xlu0 %1015
        %1017 = vrot.lane.b32.xlu0 %v983, 8
        %v1018 = vpop.permute.xlu0 %1017
        %1019 = vrot.lane.b32.xlu0 %v986, 8
        %v1020 = vpop.permute.xlu0 %1019
        %1021 = vrot.lane.b32.xlu0 %v989, 8
        %v1022 = vpop.permute.xlu0 %1021
        %1023 = vrot.lane.b32.xlu0 %v992, 8
        %v1024 = vpop.permute.xlu0 %1023
        %vm1041 = vcmask 97344
        %1042 = vst.msk [vmem:[#allocation2] sm:$0xff] %vm1041, %v994
        %1043 = vst.msk [vmem:[#allocation2 + $0x8] sm:$0xff] %vm1041, %v996
        %1044 = vst.msk [vmem:[#allocation2 + $0x10] sm:$0xff] %vm1041, %v998
        %1045 = vst.msk [vmem:[#allocation2 + $0x18] sm:$0xff] %vm1041, %v1000
        %1046 = vst.msk [vmem:[#allocation2 + $0x20] sm:$0xff] %vm1041, %v1002
        %1047 = vst.msk [vmem:[#allocation2 + $0x28] sm:$0xff] %vm1041, %v1004
        %1048 = vst.msk [vmem:[#allocation2 + $0x30] sm:$0xff] %vm1041, %v1006
        %1049 = vst.msk [vmem:[#allocation2 + $0x38] sm:$0xff] %vm1041, %v1008
        %1050 = vst.msk [vmem:[#allocation2 + $0x40] sm:$0xff] %vm1041, %v1010
        %1051 = vst.msk [vmem:[#allocation2 + $0x48] sm:$0xff] %vm1041, %v1012
        %1052 = vst.msk [vmem:[#allocation2 + $0x50] sm:$0xff] %vm1041, %v1014
        %1053 = vst.msk [vmem:[#allocation2 + $0x58] sm:$0xff] %vm1041, %v1016
        %1054 = vst.msk [vmem:[#allocation2 + $0x60] sm:$0xff] %vm1041, %v1018
        %1055 = vst.msk [vmem:[#allocation2 + $0x68] sm:$0xff] %vm1041, %v1020
        %1056 = vst.msk [vmem:[#allocation2 + $0x70] sm:$0xff] %vm1041, %v1022
        %1057 = vst.msk [vmem:[#allocation2 + $0x78] sm:$0xff] %vm1041, %v1024
        %s1058 = sadd.s32 %s185, 1
        %s1059 = smul.u32 %s1058, 3
        %s1060 = smul.addr %s1059, 4
        %s1061 = scalar_lea.vmem %s182, %s1060
        %v1062 = vld [vmem:[%s1061] sm:$0xf]
        %v1063 = vld [vmem:[%s1061 + $0x4] sm:$0xf]
        %v1064 = vld [vmem:[%s1061 + $0xc] sm:$0xf]
        %v1065 = vld [vmem:[%s1061 + $0x10] sm:$0xf]
        %v1066 = vld [vmem:[%s1061 + $0x18] sm:$0xf]
        %v1067 = vld [vmem:[%s1061 + $0x1c] sm:$0xf]
        %v1068 = vld [vmem:[%s1061 + $0x24] sm:$0xf]
        %v1069 = vld [vmem:[%s1061 + $0x28] sm:$0xf]
        %v1070 = vld [vmem:[%s1061 + $0x30] sm:$0xf]
        %v1071 = vld [vmem:[%s1061 + $0x34] sm:$0xf]
        %v1072 = vld [vmem:[%s1061 + $0x3c] sm:$0xf]
        %v1073 = vld [vmem:[%s1061 + $0x40] sm:$0xf]
        %v1074 = vld [vmem:[%s1061 + $0x48] sm:$0xf]
        %v1075 = vld [vmem:[%s1061 + $0x4c] sm:$0xf]
        %v1076 = vld [vmem:[%s1061 + $0x54] sm:$0xf]
        %v1077 = vld [vmem:[%s1061 + $0x58] sm:$0xf]
        %v1078 = vld [vmem:[%s1061 + $0x60] sm:$0xf]
        %v1079 = vld [vmem:[%s1061 + $0x64] sm:$0xf]
        %v1080 = vld [vmem:[%s1061 + $0x6c] sm:$0xf]
        %v1081 = vld [vmem:[%s1061 + $0x70] sm:$0xf]
        %v1082 = vld [vmem:[%s1061 + $0x78] sm:$0xf]
        %v1083 = vld [vmem:[%s1061 + $0x7c] sm:$0xf]
        %v1084 = vld [vmem:[%s1061 + $0x84] sm:$0xf]
        %v1085 = vld [vmem:[%s1061 + $0x88] sm:$0xf]
        %v1086 = vld [vmem:[%s1061 + $0x90] sm:$0xf]
        %v1087 = vld [vmem:[%s1061 + $0x94] sm:$0xf]
        %v1088 = vld [vmem:[%s1061 + $0x9c] sm:$0xf]
        %v1089 = vld [vmem:[%s1061 + $0xa0] sm:$0xf]
        %v1090 = vld [vmem:[%s1061 + $0xa8] sm:$0xf]
        %v1091 = vld [vmem:[%s1061 + $0xac] sm:$0xf]
        %v1092 = vld [vmem:[%s1061 + $0xb4] sm:$0xf]
        %v1093 = vld [vmem:[%s1061 + $0xb8] sm:$0xf]
        %v1126 = vunpack.c.l.b16 %v1062
        %v1127 = vunpack.c.l.b16 %v1063
        %v1128 = vunpack.c.l.b16 %v1064
        %v1129 = vunpack.c.l.b16 %v1065
        %v1130 = vunpack.c.l.b16 %v1066
        %v1131 = vunpack.c.l.b16 %v1067
        %v1132 = vunpack.c.l.b16 %v1068
        %v1133 = vunpack.c.l.b16 %v1069
        %v1134 = vunpack.c.l.b16 %v1070
        %v1135 = vunpack.c.l.b16 %v1071
        %v1136 = vunpack.c.l.b16 %v1072
        %v1137 = vunpack.c.l.b16 %v1073
        %v1138 = vunpack.c.l.b16 %v1074
        %v1139 = vunpack.c.l.b16 %v1075
        %v1140 = vunpack.c.l.b16 %v1076
        %v1141 = vunpack.c.l.b16 %v1077
        %v1142 = vunpack.c.l.b16 %v1078
        %v1143 = vunpack.c.l.b16 %v1079
        %v1144 = vunpack.c.l.b16 %v1080
        %v1145 = vunpack.c.l.b16 %v1081
        %v1146 = vunpack.c.l.b16 %v1082
        %v1147 = vunpack.c.l.b16 %v1083
        %v1148 = vunpack.c.l.b16 %v1084
        %v1149 = vunpack.c.l.b16 %v1085
        %v1150 = vunpack.c.l.b16 %v1086
        %v1151 = vunpack.c.l.b16 %v1087
        %v1152 = vunpack.c.l.b16 %v1088
        %v1153 = vunpack.c.l.b16 %v1089
        %v1154 = vunpack.c.l.b16 %v1090
        %v1155 = vunpack.c.l.b16 %v1091
        %v1156 = vunpack.c.l.b16 %v1092
        %v1157 = vunpack.c.l.b16 %v1093
        %v1158 = vpack.c.b16 %v1127, %v1126
        %v1159 = vpack.c.b16 %v1129, %v1128
        %v1160 = vpack.c.b16 %v1131, %v1130
        %v1161 = vpack.c.b16 %v1133, %v1132
        %v1162 = vpack.c.b16 %v1135, %v1134
        %v1163 = vpack.c.b16 %v1137, %v1136
        %v1164 = vpack.c.b16 %v1139, %v1138
        %v1165 = vpack.c.b16 %v1141, %v1140
        %v1166 = vpack.c.b16 %v1143, %v1142
        %v1167 = vpack.c.b16 %v1145, %v1144
        %v1168 = vpack.c.b16 %v1147, %v1146
        %v1169 = vpack.c.b16 %v1149, %v1148
        %v1170 = vpack.c.b16 %v1151, %v1150
        %v1171 = vpack.c.b16 %v1153, %v1152
        %v1172 = vpack.c.b16 %v1155, %v1154
        %v1173 = vpack.c.b16 %v1157, %v1156
        %1174 = vrot.lane.b32.xlu0 %v1158, 12
        %v1175 = vpop.permute.xlu0 %1174
        %1176 = vrot.lane.b32.xlu0 %v1159, 12
        %v1177 = vpop.permute.xlu0 %1176
        %1178 = vrot.lane.b32.xlu0 %v1160, 12
        %v1179 = vpop.permute.xlu0 %1178
        %1180 = vrot.lane.b32.xlu0 %v1161, 12
        %v1181 = vpop.permute.xlu0 %1180
        %1182 = vrot.lane.b32.xlu0 %v1162, 12
        %v1183 = vpop.permute.xlu0 %1182
        %1184 = vrot.lane.b32.xlu0 %v1163, 12
        %v1185 = vpop.permute.xlu0 %1184
        %1186 = vrot.lane.b32.xlu0 %v1164, 12
        %v1187 = vpop.permute.xlu0 %1186
        %1188 = vrot.lane.b32.xlu0 %v1165, 12
        %v1189 = vpop.permute.xlu0 %1188
        %1190 = vrot.lane.b32.xlu0 %v1166, 12
        %v1191 = vpop.permute.xlu0 %1190
        %1192 = vrot.lane.b32.xlu0 %v1167, 12
        %v1193 = vpop.permute.xlu0 %1192
        %1194 = vrot.lane.b32.xlu0 %v1168, 12
        %v1195 = vpop.permute.xlu0 %1194
        %1196 = vrot.lane.b32.xlu0 %v1169, 12
        %v1197 = vpop.permute.xlu0 %1196
        %1198 = vrot.lane.b32.xlu0 %v1170, 12
        %v1199 = vpop.permute.xlu0 %1198
        %1200 = vrot.lane.b32.xlu0 %v1171, 12
        %v1201 = vpop.permute.xlu0 %1200
        %1202 = vrot.lane.b32.xlu0 %v1172, 12
        %v1203 = vpop.permute.xlu0 %1202
        %1204 = vrot.lane.b32.xlu0 %v1173, 12
        %v1205 = vpop.permute.xlu0 %1204
        %vm1222 = vcmask 130144
        %1223 = vst.msk [vmem:[#allocation2] sm:$0xff] %vm1222, %v1175
        %1224 = vst.msk [vmem:[#allocation2 + $0x8] sm:$0xff] %vm1222, %v1177
        %1225 = vst.msk [vmem:[#allocation2 + $0x10] sm:$0xff] %vm1222, %v1179
        %1226 = vst.msk [vmem:[#allocation2 + $0x18] sm:$0xff] %vm1222, %v1181
        %1227 = vst.msk [vmem:[#allocation2 + $0x20] sm:$0xff] %vm1222, %v1183
        %1228 = vst.msk [vmem:[#allocation2 + $0x28] sm:$0xff] %vm1222, %v1185
        %1229 = vst.msk [vmem:[#allocation2 + $0x30] sm:$0xff] %vm1222, %v1187
        %1230 = vst.msk [vmem:[#allocation2 + $0x38] sm:$0xff] %vm1222, %v1189
        %1231 = vst.msk [vmem:[#allocation2 + $0x40] sm:$0xff] %vm1222, %v1191
        %1232 = vst.msk [vmem:[#allocation2 + $0x48] sm:$0xff] %vm1222, %v1193
        %1233 = vst.msk [vmem:[#allocation2 + $0x50] sm:$0xff] %vm1222, %v1195
        %1234 = vst.msk [vmem:[#allocation2 + $0x58] sm:$0xff] %vm1222, %v1197
        %1235 = vst.msk [vmem:[#allocation2 + $0x60] sm:$0xff] %vm1222, %v1199
        %1236 = vst.msk [vmem:[#allocation2 + $0x68] sm:$0xff] %vm1222, %v1201
        %1237 = vst.msk [vmem:[#allocation2 + $0x70] sm:$0xff] %vm1222, %v1203
        %1238 = vst.msk [vmem:[#allocation2 + $0x78] sm:$0xff] %vm1222, %v1205
        %v1239 = vld [vmem:[%s1061] sm:$0xf]
        %v1240 = vld [vmem:[%s1061 + $0x4] sm:$0xf]
        %v1241 = vld [vmem:[%s1061 + $0x8] sm:$0x1]
        %v1242 = vld [vmem:[%s1061 + $0xc] sm:$0xf]
        %v1243 = vld [vmem:[%s1061 + $0x10] sm:$0xf]
        %v1244 = vld [vmem:[%s1061 + $0x14] sm:$0x1]
        %v1245 = vld [vmem:[%s1061 + $0x18] sm:$0xf]
        %v1246 = vld [vmem:[%s1061 + $0x1c] sm:$0xf]
        %v1247 = vld [vmem:[%s1061 + $0x20] sm:$0x1]
        %v1248 = vld [vmem:[%s1061 + $0x24] sm:$0xf]
        %v1249 = vld [vmem:[%s1061 + $0x28] sm:$0xf]
        %v1250 = vld [vmem:[%s1061 + $0x2c] sm:$0x1]
        %v1251 = vld [vmem:[%s1061 + $0x30] sm:$0xf]
        %v1252 = vld [vmem:[%s1061 + $0x34] sm:$0xf]
        %v1253 = vld [vmem:[%s1061 + $0x38] sm:$0x1]
        %v1254 = vld [vmem:[%s1061 + $0x3c] sm:$0xf]
        %v1255 = vld [vmem:[%s1061 + $0x40] sm:$0xf]
        %v1256 = vld [vmem:[%s1061 + $0x44] sm:$0x1]
        %v1257 = vld [vmem:[%s1061 + $0x48] sm:$0xf]
        %v1258 = vld [vmem:[%s1061 + $0x4c] sm:$0xf]
        %v1259 = vld [vmem:[%s1061 + $0x50] sm:$0x1]
        %v1260 = vld [vmem:[%s1061 + $0x54] sm:$0xf]
        %v1261 = vld [vmem:[%s1061 + $0x58] sm:$0xf]
        %v1262 = vld [vmem:[%s1061 + $0x5c] sm:$0x1]
        %v1263 = vld [vmem:[%s1061 + $0x60] sm:$0xf]
        %v1264 = vld [vmem:[%s1061 + $0x64] sm:$0xf]
        %v1265 = vld [vmem:[%s1061 + $0x68] sm:$0x1]
        %v1266 = vld [vmem:[%s1061 + $0x6c] sm:$0xf]
        %v1267 = vld [vmem:[%s1061 + $0x70] sm:$0xf]
        %v1268 = vld [vmem:[%s1061 + $0x74] sm:$0x1]
        %v1269 = vld [vmem:[%s1061 + $0x78] sm:$0xf]
        %v1270 = vld [vmem:[%s1061 + $0x7c] sm:$0xf]
        %v1271 = vld [vmem:[%s1061 + $0x80] sm:$0x1]
        %v1272 = vld [vmem:[%s1061 + $0x84] sm:$0xf]
        %v1273 = vld [vmem:[%s1061 + $0x88] sm:$0xf]
        %v1274 = vld [vmem:[%s1061 + $0x8c] sm:$0x1]
        %v1275 = vld [vmem:[%s1061 + $0x90] sm:$0xf]
        %v1276 = vld [vmem:[%s1061 + $0x94] sm:$0xf]
        %v1277 = vld [vmem:[%s1061 + $0x98] sm:$0x1]
        %v1278 = vld [vmem:[%s1061 + $0x9c] sm:$0xf]
        %v1279 = vld [vmem:[%s1061 + $0xa0] sm:$0xf]
        %v1280 = vld [vmem:[%s1061 + $0xa4] sm:$0x1]
        %v1281 = vld [vmem:[%s1061 + $0xa8] sm:$0xf]
        %v1282 = vld [vmem:[%s1061 + $0xac] sm:$0xf]
        %v1283 = vld [vmem:[%s1061 + $0xb0] sm:$0x1]
        %v1284 = vld [vmem:[%s1061 + $0xb4] sm:$0xf]
        %v1285 = vld [vmem:[%s1061 + $0xb8] sm:$0xf]
        %v1286 = vld [vmem:[%s1061 + $0xbc] sm:$0x1]
        %v1335 = vunpack.c.l.b16 %v1239
        %v1336 = vunpack.c.l.b16 %v1240
        %v1337 = vunpack.c.l.b16 %v1241
        %v1338 = vunpack.c.l.b16 %v1242
        %v1339 = vunpack.c.l.b16 %v1243
        %v1340 = vunpack.c.l.b16 %v1244
        %v1341 = vunpack.c.l.b16 %v1245
        %v1342 = vunpack.c.l.b16 %v1246
        %v1343 = vunpack.c.l.b16 %v1247
        %v1344 = vunpack.c.l.b16 %v1248
        %v1345 = vunpack.c.l.b16 %v1249
        %v1346 = vunpack.c.l.b16 %v1250
        %v1347 = vunpack.c.l.b16 %v1251
        %v1348 = vunpack.c.l.b16 %v1252
        %v1349 = vunpack.c.l.b16 %v1253
        %v1350 = vunpack.c.l.b16 %v1254
        %v1351 = vunpack.c.l.b16 %v1255
        %v1352 = vunpack.c.l.b16 %v1256
        %v1353 = vunpack.c.l.b16 %v1257
        %v1354 = vunpack.c.l.b16 %v1258
        %v1355 = vunpack.c.l.b16 %v1259
        %v1356 = vunpack.c.l.b16 %v1260
        %v1357 = vunpack.c.l.b16 %v1261
        %v1358 = vunpack.c.l.b16 %v1262
        %v1359 = vunpack.c.l.b16 %v1263
        %v1360 = vunpack.c.l.b16 %v1264
        %v1361 = vunpack.c.l.b16 %v1265
        %v1362 = vunpack.c.l.b16 %v1266
        %v1363 = vunpack.c.l.b16 %v1267
        %v1364 = vunpack.c.l.b16 %v1268
        %v1365 = vunpack.c.l.b16 %v1269
        %v1366 = vunpack.c.l.b16 %v1270
        %v1367 = vunpack.c.l.b16 %v1271
        %v1368 = vunpack.c.l.b16 %v1272
        %v1369 = vunpack.c.l.b16 %v1273
        %v1370 = vunpack.c.l.b16 %v1274
        %v1371 = vunpack.c.l.b16 %v1275
        %v1372 = vunpack.c.l.b16 %v1276
        %v1373 = vunpack.c.l.b16 %v1277
        %v1374 = vunpack.c.l.b16 %v1278
        %v1375 = vunpack.c.l.b16 %v1279
        %v1376 = vunpack.c.l.b16 %v1280
        %v1377 = vunpack.c.l.b16 %v1281
        %v1378 = vunpack.c.l.b16 %v1282
        %v1379 = vunpack.c.l.b16 %v1283
        %v1380 = vunpack.c.l.b16 %v1284
        %v1381 = vunpack.c.l.b16 %v1285
        %v1382 = vunpack.c.l.b16 %v1286
        %v1383 = vpack.c.b16 %v1336, %v1335
        %v1384 = vpack.c.b16 %v1337, %v1337
        %v1385 = vpack.c.b16 %v1339, %v1338
        %v1386 = vpack.c.b16 %v1340, %v1340
        %v1387 = vpack.c.b16 %v1342, %v1341
        %v1388 = vpack.c.b16 %v1343, %v1343
        %v1389 = vpack.c.b16 %v1345, %v1344
        %v1390 = vpack.c.b16 %v1346, %v1346
        %v1391 = vpack.c.b16 %v1348, %v1347
        %v1392 = vpack.c.b16 %v1349, %v1349
        %v1393 = vpack.c.b16 %v1351, %v1350
        %v1394 = vpack.c.b16 %v1352, %v1352
        %v1395 = vpack.c.b16 %v1354, %v1353
        %v1396 = vpack.c.b16 %v1355, %v1355
        %v1397 = vpack.c.b16 %v1357, %v1356
        %v1398 = vpack.c.b16 %v1358, %v1358
        %v1399 = vpack.c.b16 %v1360, %v1359
        %v1400 = vpack.c.b16 %v1361, %v1361
        %v1401 = vpack.c.b16 %v1363, %v1362
        %v1402 = vpack.c.b16 %v1364, %v1364
        %v1403 = vpack.c.b16 %v1366, %v1365
        %v1404 = vpack.c.b16 %v1367, %v1367
        %v1405 = vpack.c.b16 %v1369, %v1368
        %v1406 = vpack.c.b16 %v1370, %v1370
        %v1407 = vpack.c.b16 %v1372, %v1371
        %v1408 = vpack.c.b16 %v1373, %v1373
        %v1409 = vpack.c.b16 %v1375, %v1374
        %v1410 = vpack.c.b16 %v1376, %v1376
        %v1411 = vpack.c.b16 %v1378, %v1377
        %v1412 = vpack.c.b16 %v1379, %v1379
        %v1413 = vpack.c.b16 %v1381, %v1380
        %v1414 = vpack.c.b16 %v1382, %v1382
        %v1416 = vshrl.u32 %v1383, 16
        %v1418 = vshll.u32 %v1383, 16
        %v1420 = vrot.slane %v1418, 1
        %v1421 = vor.u32 %v1416, %v1420
        %v1423 = vshll.u32 %v1384, 16
        %v1425 = vrot.slane %v1423, 1
        %v1426 = vsel %vm510, %v1421, %v1425
        %v1428 = vshrl.u32 %v1385, 16
        %v1430 = vshll.u32 %v1385, 16
        %v1432 = vrot.slane %v1430, 1
        %v1433 = vor.u32 %v1428, %v1432
        %v1435 = vshll.u32 %v1386, 16
        %v1437 = vrot.slane %v1435, 1
        %v1438 = vsel %vm510, %v1433, %v1437
        %v1440 = vshrl.u32 %v1387, 16
        %v1442 = vshll.u32 %v1387, 16
        %v1444 = vrot.slane %v1442, 1
        %v1445 = vor.u32 %v1440, %v1444
        %v1447 = vshll.u32 %v1388, 16
        %v1449 = vrot.slane %v1447, 1
        %v1450 = vsel %vm510, %v1445, %v1449
        %v1452 = vshrl.u32 %v1389, 16
        %v1454 = vshll.u32 %v1389, 16
        %v1456 = vrot.slane %v1454, 1
        %v1457 = vor.u32 %v1452, %v1456
        %v1459 = vshll.u32 %v1390, 16
        %v1461 = vrot.slane %v1459, 1
        %v1462 = vsel %vm510, %v1457, %v1461
        %v1464 = vshrl.u32 %v1391, 16
        %v1466 = vshll.u32 %v1391, 16
        %v1468 = vrot.slane %v1466, 1
        %v1469 = vor.u32 %v1464, %v1468
        %v1471 = vshll.u32 %v1392, 16
        %v1473 = vrot.slane %v1471, 1
        %v1474 = vsel %vm510, %v1469, %v1473
        %v1476 = vshrl.u32 %v1393, 16
        %v1478 = vshll.u32 %v1393, 16
        %v1480 = vrot.slane %v1478, 1
        %v1481 = vor.u32 %v1476, %v1480
        %v1483 = vshll.u32 %v1394, 16
        %v1485 = vrot.slane %v1483, 1
        %v1486 = vsel %vm510, %v1481, %v1485
        %v1488 = vshrl.u32 %v1395, 16
        %v1490 = vshll.u32 %v1395, 16
        %v1492 = vrot.slane %v1490, 1
        %v1493 = vor.u32 %v1488, %v1492
        %v1495 = vshll.u32 %v1396, 16
        %v1497 = vrot.slane %v1495, 1
        %v1498 = vsel %vm510, %v1493, %v1497
        %v1500 = vshrl.u32 %v1397, 16
        %v1502 = vshll.u32 %v1397, 16
        %v1504 = vrot.slane %v1502, 1
        %v1505 = vor.u32 %v1500, %v1504
        %v1507 = vshll.u32 %v1398, 16
        %v1509 = vrot.slane %v1507, 1
        %v1510 = vsel %vm510, %v1505, %v1509
        %v1512 = vshrl.u32 %v1399, 16
        %v1514 = vshll.u32 %v1399, 16
        %v1516 = vrot.slane %v1514, 1
        %v1517 = vor.u32 %v1512, %v1516
        %v1519 = vshll.u32 %v1400, 16
        %v1521 = vrot.slane %v1519, 1
        %v1522 = vsel %vm510, %v1517, %v1521
        %v1524 = vshrl.u32 %v1401, 16
        %v1526 = vshll.u32 %v1401, 16
        %v1528 = vrot.slane %v1526, 1
        %v1529 = vor.u32 %v1524, %v1528
        %v1531 = vshll.u32 %v1402, 16
        %v1533 = vrot.slane %v1531, 1
        %v1534 = vsel %vm510, %v1529, %v1533
        %v1536 = vshrl.u32 %v1403, 16
        %v1538 = vshll.u32 %v1403, 16
        %v1540 = vrot.slane %v1538, 1
        %v1541 = vor.u32 %v1536, %v1540
        %v1543 = vshll.u32 %v1404, 16
        %v1545 = vrot.slane %v1543, 1
        %v1546 = vsel %vm510, %v1541, %v1545
        %v1548 = vshrl.u32 %v1405, 16
        %v1550 = vshll.u32 %v1405, 16
        %v1552 = vrot.slane %v1550, 1
        %v1553 = vor.u32 %v1548, %v1552
        %v1555 = vshll.u32 %v1406, 16
        %v1557 = vrot.slane %v1555, 1
        %v1558 = vsel %vm510, %v1553, %v1557
        %v1560 = vshrl.u32 %v1407, 16
        %v1562 = vshll.u32 %v1407, 16
        %v1564 = vrot.slane %v1562, 1
        %v1565 = vor.u32 %v1560, %v1564
        %v1567 = vshll.u32 %v1408, 16
        %v1569 = vrot.slane %v1567, 1
        %v1570 = vsel %vm510, %v1565, %v1569
        %v1572 = vshrl.u32 %v1409, 16
        %v1574 = vshll.u32 %v1409, 16
        %v1576 = vrot.slane %v1574, 1
        %v1577 = vor.u32 %v1572, %v1576
        %v1579 = vshll.u32 %v1410, 16
        %v1581 = vrot.slane %v1579, 1
        %v1582 = vsel %vm510, %v1577, %v1581
        %v1584 = vshrl.u32 %v1411, 16
        %v1586 = vshll.u32 %v1411, 16
        %v1588 = vrot.slane %v1586, 1
        %v1589 = vor.u32 %v1584, %v1588
        %v1591 = vshll.u32 %v1412, 16
        %v1593 = vrot.slane %v1591, 1
        %v1594 = vsel %vm510, %v1589, %v1593
        %v1596 = vshrl.u32 %v1413, 16
        %v1598 = vshll.u32 %v1413, 16
        %v1600 = vrot.slane %v1598, 1
        %v1601 = vor.u32 %v1596, %v1600
        %v1603 = vshll.u32 %v1414, 16
        %v1605 = vrot.slane %v1603, 1
        %v1606 = vsel %vm510, %v1601, %v1605
        %1607 = vrot.lane.b32.xlu0 %v1426, 16
        %v1608 = vpop.permute.xlu0 %1607
        %1609 = vrot.lane.b32.xlu0 %v1438, 16
        %v1610 = vpop.permute.xlu0 %1609
        %1611 = vrot.lane.b32.xlu0 %v1450, 16
        %v1612 = vpop.permute.xlu0 %1611
        %1613 = vrot.lane.b32.xlu0 %v1462, 16
        %v1614 = vpop.permute.xlu0 %1613
        %1615 = vrot.lane.b32.xlu0 %v1474, 16
        %v1616 = vpop.permute.xlu0 %1615
        %1617 = vrot.lane.b32.xlu0 %v1486, 16
        %v1618 = vpop.permute.xlu0 %1617
        %1619 = vrot.lane.b32.xlu0 %v1498, 16
        %v1620 = vpop.permute.xlu0 %1619
        %1621 = vrot.lane.b32.xlu0 %v1510, 16
        %v1622 = vpop.permute.xlu0 %1621
        %1623 = vrot.lane.b32.xlu0 %v1522, 16
        %v1624 = vpop.permute.xlu0 %1623
        %1625 = vrot.lane.b32.xlu0 %v1534, 16
        %v1626 = vpop.permute.xlu0 %1625
        %1627 = vrot.lane.b32.xlu0 %v1546, 16
        %v1628 = vpop.permute.xlu0 %1627
        %1629 = vrot.lane.b32.xlu0 %v1558, 16
        %v1630 = vpop.permute.xlu0 %1629
        %1631 = vrot.lane.b32.xlu0 %v1570, 16
        %v1632 = vpop.permute.xlu0 %1631
        %1633 = vrot.lane.b32.xlu0 %v1582, 16
        %v1634 = vpop.permute.xlu0 %1633
        %1635 = vrot.lane.b32.xlu0 %v1594, 16
        %v1636 = vpop.permute.xlu0 %1635
        %1637 = vrot.lane.b32.xlu0 %v1606, 16
        %v1638 = vpop.permute.xlu0 %1637
        %vm1655 = vcmask 162944
        %1656 = vst.msk [vmem:[#allocation2] sm:$0xff] %vm1655, %v1608
        %1657 = vst.msk [vmem:[#allocation2 + $0x8] sm:$0xff] %vm1655, %v1610
        %1658 = vst.msk [vmem:[#allocation2 + $0x10] sm:$0xff] %vm1655, %v1612
        %1659 = vst.msk [vmem:[#allocation2 + $0x18] sm:$0xff] %vm1655, %v1614
        %1660 = vst.msk [vmem:[#allocation2 + $0x20] sm:$0xff] %vm1655, %v1616
        %1661 = vst.msk [vmem:[#allocation2 + $0x28] sm:$0xff] %vm1655, %v1618
        %1662 = vst.msk [vmem:[#allocation2 + $0x30] sm:$0xff] %vm1655, %v1620
        %1663 = vst.msk [vmem:[#allocation2 + $0x38] sm:$0xff] %vm1655, %v1622
        %1664 = vst.msk [vmem:[#allocation2 + $0x40] sm:$0xff] %vm1655, %v1624
        %1665 = vst.msk [vmem:[#allocation2 + $0x48] sm:$0xff] %vm1655, %v1626
        %1666 = vst.msk [vmem:[#allocation2 + $0x50] sm:$0xff] %vm1655, %v1628
        %1667 = vst.msk [vmem:[#allocation2 + $0x58] sm:$0xff] %vm1655, %v1630
        %1668 = vst.msk [vmem:[#allocation2 + $0x60] sm:$0xff] %vm1655, %v1632
        %1669 = vst.msk [vmem:[#allocation2 + $0x68] sm:$0xff] %vm1655, %v1634
        %1670 = vst.msk [vmem:[#allocation2 + $0x70] sm:$0xff] %vm1655, %v1636
        %1671 = vst.msk [vmem:[#allocation2 + $0x78] sm:$0xff] %vm1655, %v1638
        %v1672 = vld [vmem:[%s1061] sm:$0xe]
        %v1673 = vld [vmem:[%s1061 + $0x4] sm:$0xf]
        %v1674 = vld [vmem:[%s1061 + $0x8] sm:$0x1]
        %v1675 = vld [vmem:[%s1061 + $0xc] sm:$0xe]
        %v1676 = vld [vmem:[%s1061 + $0x10] sm:$0xf]
        %v1677 = vld [vmem:[%s1061 + $0x14] sm:$0x1]
        %v1678 = vld [vmem:[%s1061 + $0x18] sm:$0xe]
        %v1679 = vld [vmem:[%s1061 + $0x1c] sm:$0xf]
        %v1680 = vld [vmem:[%s1061 + $0x20] sm:$0x1]
        %v1681 = vld [vmem:[%s1061 + $0x24] sm:$0xe]
        %v1682 = vld [vmem:[%s1061 + $0x28] sm:$0xf]
        %v1683 = vld [vmem:[%s1061 + $0x2c] sm:$0x1]
        %v1684 = vld [vmem:[%s1061 + $0x30] sm:$0xe]
        %v1685 = vld [vmem:[%s1061 + $0x34] sm:$0xf]
        %v1686 = vld [vmem:[%s1061 + $0x38] sm:$0x1]
        %v1687 = vld [vmem:[%s1061 + $0x3c] sm:$0xe]
        %v1688 = vld [vmem:[%s1061 + $0x40] sm:$0xf]
        %v1689 = vld [vmem:[%s1061 + $0x44] sm:$0x1]
        %v1690 = vld [vmem:[%s1061 + $0x48] sm:$0xe]
        %v1691 = vld [vmem:[%s1061 + $0x4c] sm:$0xf]
        %v1692 = vld [vmem:[%s1061 + $0x50] sm:$0x1]
        %v1693 = vld [vmem:[%s1061 + $0x54] sm:$0xe]
        %v1694 = vld [vmem:[%s1061 + $0x58] sm:$0xf]
        %v1695 = vld [vmem:[%s1061 + $0x5c] sm:$0x1]
        %v1696 = vld [vmem:[%s1061 + $0x60] sm:$0xe]
        %v1697 = vld [vmem:[%s1061 + $0x64] sm:$0xf]
        %v1698 = vld [vmem:[%s1061 + $0x68] sm:$0x1]
        %v1699 = vld [vmem:[%s1061 + $0x6c] sm:$0xe]
        %v1700 = vld [vmem:[%s1061 + $0x70] sm:$0xf]
        %v1701 = vld [vmem:[%s1061 + $0x74] sm:$0x1]
        %v1702 = vld [vmem:[%s1061 + $0x78] sm:$0xe]
        %v1703 = vld [vmem:[%s1061 + $0x7c] sm:$0xf]
        %v1704 = vld [vmem:[%s1061 + $0x80] sm:$0x1]
        %v1705 = vld [vmem:[%s1061 + $0x84] sm:$0xe]
        %v1706 = vld [vmem:[%s1061 + $0x88] sm:$0xf]
        %v1707 = vld [vmem:[%s1061 + $0x8c] sm:$0x1]
        %v1708 = vld [vmem:[%s1061 + $0x90] sm:$0xe]
        %v1709 = vld [vmem:[%s1061 + $0x94] sm:$0xf]
        %v1710 = vld [vmem:[%s1061 + $0x98] sm:$0x1]
        %v1711 = vld [vmem:[%s1061 + $0x9c] sm:$0xe]
        %v1712 = vld [vmem:[%s1061 + $0xa0] sm:$0xf]
        %v1713 = vld [vmem:[%s1061 + $0xa4] sm:$0x1]
        %v1714 = vld [vmem:[%s1061 + $0xa8] sm:$0xe]
        %v1715 = vld [vmem:[%s1061 + $0xac] sm:$0xf]
        %v1716 = vld [vmem:[%s1061 + $0xb0] sm:$0x1]
        %v1717 = vld [vmem:[%s1061 + $0xb4] sm:$0xe]
        %v1718 = vld [vmem:[%s1061 + $0xb8] sm:$0xf]
        %v1719 = vld [vmem:[%s1061 + $0xbc] sm:$0x1]
        %v1768 = vunpack.c.l.b16 %v1672
        %v1769 = vunpack.c.l.b16 %v1673
        %v1770 = vunpack.c.l.b16 %v1674
        %v1771 = vunpack.c.l.b16 %v1675
        %v1772 = vunpack.c.l.b16 %v1676
        %v1773 = vunpack.c.l.b16 %v1677
        %v1774 = vunpack.c.l.b16 %v1678
        %v1775 = vunpack.c.l.b16 %v1679
        %v1776 = vunpack.c.l.b16 %v1680
        %v1777 = vunpack.c.l.b16 %v1681
        %v1778 = vunpack.c.l.b16 %v1682
        %v1779 = vunpack.c.l.b16 %v1683
        %v1780 = vunpack.c.l.b16 %v1684
        %v1781 = vunpack.c.l.b16 %v1685
        %v1782 = vunpack.c.l.b16 %v1686
        %v1783 = vunpack.c.l.b16 %v1687
        %v1784 = vunpack.c.l.b16 %v1688
        %v1785 = vunpack.c.l.b16 %v1689
        %v1786 = vunpack.c.l.b16 %v1690
        %v1787 = vunpack.c.l.b16 %v1691
        %v1788 = vunpack.c.l.b16 %v1692
        %v1789 = vunpack.c.l.b16 %v1693
        %v1790 = vunpack.c.l.b16 %v1694
        %v1791 = vunpack.c.l.b16 %v1695
        %v1792 = vunpack.c.l.b16 %v1696
        %v1793 = vunpack.c.l.b16 %v1697
        %v1794 = vunpack.c.l.b16 %v1698
        %v1795 = vunpack.c.l.b16 %v1699
        %v1796 = vunpack.c.l.b16 %v1700
        %v1797 = vunpack.c.l.b16 %v1701
        %v1798 = vunpack.c.l.b16 %v1702
        %v1799 = vunpack.c.l.b16 %v1703
        %v1800 = vunpack.c.l.b16 %v1704
        %v1801 = vunpack.c.l.b16 %v1705
        %v1802 = vunpack.c.l.b16 %v1706
        %v1803 = vunpack.c.l.b16 %v1707
        %v1804 = vunpack.c.l.b16 %v1708
        %v1805 = vunpack.c.l.b16 %v1709
        %v1806 = vunpack.c.l.b16 %v1710
        %v1807 = vunpack.c.l.b16 %v1711
        %v1808 = vunpack.c.l.b16 %v1712
        %v1809 = vunpack.c.l.b16 %v1713
        %v1810 = vunpack.c.l.b16 %v1714
        %v1811 = vunpack.c.l.b16 %v1715
        %v1812 = vunpack.c.l.b16 %v1716
        %v1813 = vunpack.c.l.b16 %v1717
        %v1814 = vunpack.c.l.b16 %v1718
        %v1815 = vunpack.c.l.b16 %v1719
        %v1816 = vpack.c.b16 %v1769, %v1768
        %v1817 = vpack.c.b16 %v1770, %v1770
        %v1818 = vpack.c.b16 %v1772, %v1771
        %v1819 = vpack.c.b16 %v1773, %v1773
        %v1820 = vpack.c.b16 %v1775, %v1774
        %v1821 = vpack.c.b16 %v1776, %v1776
        %v1822 = vpack.c.b16 %v1778, %v1777
        %v1823 = vpack.c.b16 %v1779, %v1779
        %v1824 = vpack.c.b16 %v1781, %v1780
        %v1825 = vpack.c.b16 %v1782, %v1782
        %v1826 = vpack.c.b16 %v1784, %v1783
        %v1827 = vpack.c.b16 %v1785, %v1785
        %v1828 = vpack.c.b16 %v1787, %v1786
        %v1829 = vpack.c.b16 %v1788, %v1788
        %v1830 = vpack.c.b16 %v1790, %v1789
        %v1831 = vpack.c.b16 %v1791, %v1791
        %v1832 = vpack.c.b16 %v1793, %v1792
        %v1833 = vpack.c.b16 %v1794, %v1794
        %v1834 = vpack.c.b16 %v1796, %v1795
        %v1835 = vpack.c.b16 %v1797, %v1797
        %v1836 = vpack.c.b16 %v1799, %v1798
        %v1837 = vpack.c.b16 %v1800, %v1800
        %v1838 = vpack.c.b16 %v1802, %v1801
        %v1839 = vpack.c.b16 %v1803, %v1803
        %v1840 = vpack.c.b16 %v1805, %v1804
        %v1841 = vpack.c.b16 %v1806, %v1806
        %v1842 = vpack.c.b16 %v1808, %v1807
        %v1843 = vpack.c.b16 %v1809, %v1809
        %v1844 = vpack.c.b16 %v1811, %v1810
        %v1845 = vpack.c.b16 %v1812, %v1812
        %v1846 = vpack.c.b16 %v1814, %v1813
        %v1847 = vpack.c.b16 %v1815, %v1815
        %v1848 = vrot.slane %v1816, 1
        %v1849 = vrot.slane %v1817, 1
        %v1850 = vsel %vm944, %v1848, %v1849
        %v1851 = vrot.slane %v1818, 1
        %v1852 = vrot.slane %v1819, 1
        %v1853 = vsel %vm944, %v1851, %v1852
        %v1854 = vrot.slane %v1820, 1
        %v1855 = vrot.slane %v1821, 1
        %v1856 = vsel %vm944, %v1854, %v1855
        %v1857 = vrot.slane %v1822, 1
        %v1858 = vrot.slane %v1823, 1
        %v1859 = vsel %vm944, %v1857, %v1858
        %v1860 = vrot.slane %v1824, 1
        %v1861 = vrot.slane %v1825, 1
        %v1862 = vsel %vm944, %v1860, %v1861
        %v1863 = vrot.slane %v1826, 1
        %v1864 = vrot.slane %v1827, 1
        %v1865 = vsel %vm944, %v1863, %v1864
        %v1866 = vrot.slane %v1828, 1
        %v1867 = vrot.slane %v1829, 1
        %v1868 = vsel %vm944, %v1866, %v1867
        %v1869 = vrot.slane %v1830, 1
        %v1870 = vrot.slane %v1831, 1
        %v1871 = vsel %vm944, %v1869, %v1870
        %v1872 = vrot.slane %v1832, 1
        %v1873 = vrot.slane %v1833, 1
        %v1874 = vsel %vm944, %v1872, %v1873
        %v1875 = vrot.slane %v1834, 1
        %v1876 = vrot.slane %v1835, 1
        %v1877 = vsel %vm944, %v1875, %v1876
        %v1878 = vrot.slane %v1836, 1
        %v1879 = vrot.slane %v1837, 1
        %v1880 = vsel %vm944, %v1878, %v1879
        %v1881 = vrot.slane %v1838, 1
        %v1882 = vrot.slane %v1839, 1
        %v1883 = vsel %vm944, %v1881, %v1882
        %v1884 = vrot.slane %v1840, 1
        %v1885 = vrot.slane %v1841, 1
        %v1886 = vsel %vm944, %v1884, %v1885
        %v1887 = vrot.slane %v1842, 1
        %v1888 = vrot.slane %v1843, 1
        %v1889 = vsel %vm944, %v1887, %v1888
        %v1890 = vrot.slane %v1844, 1
        %v1891 = vrot.slane %v1845, 1
        %v1892 = vsel %vm944, %v1890, %v1891
        %v1893 = vrot.slane %v1846, 1
        %v1894 = vrot.slane %v1847, 1
        %v1895 = vsel %vm944, %v1893, %v1894
        %1896 = vrot.lane.b32.xlu0 %v1850, 20
        %v1897 = vpop.permute.xlu0 %1896
        %1898 = vrot.lane.b32.xlu0 %v1853, 20
        %v1899 = vpop.permute.xlu0 %1898
        %1900 = vrot.lane.b32.xlu0 %v1856, 20
        %v1901 = vpop.permute.xlu0 %1900
        %1902 = vrot.lane.b32.xlu0 %v1859, 20
        %v1903 = vpop.permute.xlu0 %1902
        %1904 = vrot.lane.b32.xlu0 %v1862, 20
        %v1905 = vpop.permute.xlu0 %1904
        %1906 = vrot.lane.b32.xlu0 %v1865, 20
        %v1907 = vpop.permute.xlu0 %1906
        %1908 = vrot.lane.b32.xlu0 %v1868, 20
        %v1909 = vpop.permute.xlu0 %1908
        %1910 = vrot.lane.b32.xlu0 %v1871, 20
        %v1911 = vpop.permute.xlu0 %1910
        %1912 = vrot.lane.b32.xlu0 %v1874, 20
        %v1913 = vpop.permute.xlu0 %1912
        %1914 = vrot.lane.b32.xlu0 %v1877, 20
        %v1915 = vpop.permute.xlu0 %1914
        %1916 = vrot.lane.b32.xlu0 %v1880, 20
        %v1917 = vpop.permute.xlu0 %1916
        %1918 = vrot.lane.b32.xlu0 %v1883, 20
        %v1919 = vpop.permute.xlu0 %1918
        %1920 = vrot.lane.b32.xlu0 %v1886, 20
        %v1921 = vpop.permute.xlu0 %1920
        %1922 = vrot.lane.b32.xlu0 %v1889, 20
        %v1923 = vpop.permute.xlu0 %1922
        %1924 = vrot.lane.b32.xlu0 %v1892, 20
        %v1925 = vpop.permute.xlu0 %1924
        %1926 = vrot.lane.b32.xlu0 %v1895, 20
        %v1927 = vpop.permute.xlu0 %1926
        %vm1944 = vcmask 195744
        %1945 = vst.msk [vmem:[#allocation2] sm:$0xff] %vm1944, %v1897
        %1946 = vst.msk [vmem:[#allocation2 + $0x8] sm:$0xff] %vm1944, %v1899
        %1947 = vst.msk [vmem:[#allocation2 + $0x10] sm:$0xff] %vm1944, %v1901
        %1948 = vst.msk [vmem:[#allocation2 + $0x18] sm:$0xff] %vm1944, %v1903
        %1949 = vst.msk [vmem:[#allocation2 + $0x20] sm:$0xff] %vm1944, %v1905
        %1950 = vst.msk [vmem:[#allocation2 + $0x28] sm:$0xff] %vm1944, %v1907
        %1951 = vst.msk [vmem:[#allocation2 + $0x30] sm:$0xff] %vm1944, %v1909
        %1952 = vst.msk [vmem:[#allocation2 + $0x38] sm:$0xff] %vm1944, %v1911
        %1953 = vst.msk [vmem:[#allocation2 + $0x40] sm:$0xff] %vm1944, %v1913
        %1954 = vst.msk [vmem:[#allocation2 + $0x48] sm:$0xff] %vm1944, %v1915
        %1955 = vst.msk [vmem:[#allocation2 + $0x50] sm:$0xff] %vm1944, %v1917
        %1956 = vst.msk [vmem:[#allocation2 + $0x58] sm:$0xff] %vm1944, %v1919
        %1957 = vst.msk [vmem:[#allocation2 + $0x60] sm:$0xff] %vm1944, %v1921
        %1958 = vst.msk [vmem:[#allocation2 + $0x68] sm:$0xff] %vm1944, %v1923
        %1959 = vst.msk [vmem:[#allocation2 + $0x70] sm:$0xff] %vm1944, %v1925
        %1960 = vst.msk [vmem:[#allocation2 + $0x78] sm:$0xff] %vm1944, %v1927
        %s1961 = sadd.s32 %s185, 2
        %s1962 = smul.u32 %s1961, 3
        %s1963 = smul.addr %s1962, 4
        %s1964 = scalar_lea.vmem %s182, %s1963
        %v1965 = vld [vmem:[%s1964] sm:$0xf]
        %v1966 = vld [vmem:[%s1964 + $0x4] sm:$0xf]
        %v1967 = vld [vmem:[%s1964 + $0xc] sm:$0xf]
        %v1968 = vld [vmem:[%s1964 + $0x10] sm:$0xf]
        %v1969 = vld [vmem:[%s1964 + $0x18] sm:$0xf]
        %v1970 = vld [vmem:[%s1964 + $0x1c] sm:$0xf]
        %v1971 = vld [vmem:[%s1964 + $0x24] sm:$0xf]
        %v1972 = vld [vmem:[%s1964 + $0x28] sm:$0xf]
        %v1973 = vld [vmem:[%s1964 + $0x30] sm:$0xf]
        %v1974 = vld [vmem:[%s1964 + $0x34] sm:$0xf]
        %v1975 = vld [vmem:[%s1964 + $0x3c] sm:$0xf]
        %v1976 = vld [vmem:[%s1964 + $0x40] sm:$0xf]
        %v1977 = vld [vmem:[%s1964 + $0x48] sm:$0xf]
        %v1978 = vld [vmem:[%s1964 + $0x4c] sm:$0xf]
        %v1979 = vld [vmem:[%s1964 + $0x54] sm:$0xf]
        %v1980 = vld [vmem:[%s1964 + $0x58] sm:$0xf]
        %v1981 = vld [vmem:[%s1964 + $0x60] sm:$0xf]
        %v1982 = vld [vmem:[%s1964 + $0x64] sm:$0xf]
        %v1983 = vld [vmem:[%s1964 + $0x6c] sm:$0xf]
        %v1984 = vld [vmem:[%s1964 + $0x70] sm:$0xf]
        %v1985 = vld [vmem:[%s1964 + $0x78] sm:$0xf]
        %v1986 = vld [vmem:[%s1964 + $0x7c] sm:$0xf]
        %v1987 = vld [vmem:[%s1964 + $0x84] sm:$0xf]
        %v1988 = vld [vmem:[%s1964 + $0x88] sm:$0xf]
        %v1989 = vld [vmem:[%s1964 + $0x90] sm:$0xf]
        %v1990 = vld [vmem:[%s1964 + $0x94] sm:$0xf]
        %v1991 = vld [vmem:[%s1964 + $0x9c] sm:$0xf]
        %v1992 = vld [vmem:[%s1964 + $0xa0] sm:$0xf]
        %v1993 = vld [vmem:[%s1964 + $0xa8] sm:$0xf]
        %v1994 = vld [vmem:[%s1964 + $0xac] sm:$0xf]
        %v1995 = vld [vmem:[%s1964 + $0xb4] sm:$0xf]
        %v1996 = vld [vmem:[%s1964 + $0xb8] sm:$0xf]
        %v2029 = vunpack.c.l.b16 %v1965
        %v2030 = vunpack.c.l.b16 %v1966
        %v2031 = vunpack.c.l.b16 %v1967
        %v2032 = vunpack.c.l.b16 %v1968
        %v2033 = vunpack.c.l.b16 %v1969
        %v2034 = vunpack.c.l.b16 %v1970
        %v2035 = vunpack.c.l.b16 %v1971
        %v2036 = vunpack.c.l.b16 %v1972
        %v2037 = vunpack.c.l.b16 %v1973
        %v2038 = vunpack.c.l.b16 %v1974
        %v2039 = vunpack.c.l.b16 %v1975
        %v2040 = vunpack.c.l.b16 %v1976
        %v2041 = vunpack.c.l.b16 %v1977
        %v2042 = vunpack.c.l.b16 %v1978
        %v2043 = vunpack.c.l.b16 %v1979
        %v2044 = vunpack.c.l.b16 %v1980
        %v2045 = vunpack.c.l.b16 %v1981
        %v2046 = vunpack.c.l.b16 %v1982
        %v2047 = vunpack.c.l.b16 %v1983
        %v2048 = vunpack.c.l.b16 %v1984
        %v2049 = vunpack.c.l.b16 %v1985
        %v2050 = vunpack.c.l.b16 %v1986
        %v2051 = vunpack.c.l.b16 %v1987
        %v2052 = vunpack.c.l.b16 %v1988
        %v2053 = vunpack.c.l.b16 %v1989
        %v2054 = vunpack.c.l.b16 %v1990
        %v2055 = vunpack.c.l.b16 %v1991
        %v2056 = vunpack.c.l.b16 %v1992
        %v2057 = vunpack.c.l.b16 %v1993
        %v2058 = vunpack.c.l.b16 %v1994
        %v2059 = vunpack.c.l.b16 %v1995
        %v2060 = vunpack.c.l.b16 %v1996
        %v2061 = vpack.c.b16 %v2030, %v2029
        %v2062 = vpack.c.b16 %v2032, %v2031
        %v2063 = vpack.c.b16 %v2034, %v2033
        %v2064 = vpack.c.b16 %v2036, %v2035
        %v2065 = vpack.c.b16 %v2038, %v2037
        %v2066 = vpack.c.b16 %v2040, %v2039
        %v2067 = vpack.c.b16 %v2042, %v2041
        %v2068 = vpack.c.b16 %v2044, %v2043
        %v2069 = vpack.c.b16 %v2046, %v2045
        %v2070 = vpack.c.b16 %v2048, %v2047
        %v2071 = vpack.c.b16 %v2050, %v2049
        %v2072 = vpack.c.b16 %v2052, %v2051
        %v2073 = vpack.c.b16 %v2054, %v2053
        %v2074 = vpack.c.b16 %v2056, %v2055
        %v2075 = vpack.c.b16 %v2058, %v2057
        %v2076 = vpack.c.b16 %v2060, %v2059
        %2077 = vrot.lane.b32.xlu0 %v2061, 24
        %v2078 = vpop.permute.xlu0 %2077
        %2079 = vrot.lane.b32.xlu0 %v2062, 24
        %v2080 = vpop.permute.xlu0 %2079
        %2081 = vrot.lane.b32.xlu0 %v2063, 24
        %v2082 = vpop.permute.xlu0 %2081
        %2083 = vrot.lane.b32.xlu0 %v2064, 24
        %v2084 = vpop.permute.xlu0 %2083
        %2085 = vrot.lane.b32.xlu0 %v2065, 24
        %v2086 = vpop.permute.xlu0 %2085
        %2087 = vrot.lane.b32.xlu0 %v2066, 24
        %v2088 = vpop.permute.xlu0 %2087
        %2089 = vrot.lane.b32.xlu0 %v2067, 24
        %v2090 = vpop.permute.xlu0 %2089
        %2091 = vrot.lane.b32.xlu0 %v2068, 24
        %v2092 = vpop.permute.xlu0 %2091
        %2093 = vrot.lane.b32.xlu0 %v2069, 24
        %v2094 = vpop.permute.xlu0 %2093
        %2095 = vrot.lane.b32.xlu0 %v2070, 24
        %v2096 = vpop.permute.xlu0 %2095
        %2097 = vrot.lane.b32.xlu0 %v2071, 24
        %v2098 = vpop.permute.xlu0 %2097
        %2099 = vrot.lane.b32.xlu0 %v2072, 24
        %v2100 = vpop.permute.xlu0 %2099
        %2101 = vrot.lane.b32.xlu0 %v2073, 24
        %v2102 = vpop.permute.xlu0 %2101
        %2103 = vrot.lane.b32.xlu0 %v2074, 24
        %v2104 = vpop.permute.xlu0 %2103
        %2105 = vrot.lane.b32.xlu0 %v2075, 24
        %v2106 = vpop.permute.xlu0 %2105
        %2107 = vrot.lane.b32.xlu0 %v2076, 24
        %v2108 = vpop.permute.xlu0 %2107
        %vm2125 = vcmask 228544
        %2126 = vst.msk [vmem:[#allocation2] sm:$0xff] %vm2125, %v2078
        %2127 = vst.msk [vmem:[#allocation2 + $0x8] sm:$0xff] %vm2125, %v2080
        %2128 = vst.msk [vmem:[#allocation2 + $0x10] sm:$0xff] %vm2125, %v2082
        %2129 = vst.msk [vmem:[#allocation2 + $0x18] sm:$0xff] %vm2125, %v2084
        %2130 = vst.msk [vmem:[#allocation2 + $0x20] sm:$0xff] %vm2125, %v2086
        %2131 = vst.msk [vmem:[#allocation2 + $0x28] sm:$0xff] %vm2125, %v2088
        %2132 = vst.msk [vmem:[#allocation2 + $0x30] sm:$0xff] %vm2125, %v2090
        %2133 = vst.msk [vmem:[#allocation2 + $0x38] sm:$0xff] %vm2125, %v2092
        %2134 = vst.msk [vmem:[#allocation2 + $0x40] sm:$0xff] %vm2125, %v2094
        %2135 = vst.msk [vmem:[#allocation2 + $0x48] sm:$0xff] %vm2125, %v2096
        %2136 = vst.msk [vmem:[#allocation2 + $0x50] sm:$0xff] %vm2125, %v2098
        %2137 = vst.msk [vmem:[#allocation2 + $0x58] sm:$0xff] %vm2125, %v2100
        %2138 = vst.msk [vmem:[#allocation2 + $0x60] sm:$0xff] %vm2125, %v2102
        %2139 = vst.msk [vmem:[#allocation2 + $0x68] sm:$0xff] %vm2125, %v2104
        %2140 = vst.msk [vmem:[#allocation2 + $0x70] sm:$0xff] %vm2125, %v2106
        %2141 = vst.msk [vmem:[#allocation2 + $0x78] sm:$0xff] %vm2125, %v2108
        %v2142 = vld [vmem:[%s1964] sm:$0xf]
        %v2143 = vld [vmem:[%s1964 + $0x4] sm:$0xf]
        %v2144 = vld [vmem:[%s1964 + $0x8] sm:$0x1]
        %v2145 = vld [vmem:[%s1964 + $0xc] sm:$0xf]
        %v2146 = vld [vmem:[%s1964 + $0x10] sm:$0xf]
        %v2147 = vld [vmem:[%s1964 + $0x14] sm:$0x1]
        %v2148 = vld [vmem:[%s1964 + $0x18] sm:$0xf]
        %v2149 = vld [vmem:[%s1964 + $0x1c] sm:$0xf]
        %v2150 = vld [vmem:[%s1964 + $0x20] sm:$0x1]
        %v2151 = vld [vmem:[%s1964 + $0x24] sm:$0xf]
        %v2152 = vld [vmem:[%s1964 + $0x28] sm:$0xf]
        %v2153 = vld [vmem:[%s1964 + $0x2c] sm:$0x1]
        %v2154 = vld [vmem:[%s1964 + $0x30] sm:$0xf]
        %v2155 = vld [vmem:[%s1964 + $0x34] sm:$0xf]
        %v2156 = vld [vmem:[%s1964 + $0x38] sm:$0x1]
        %v2157 = vld [vmem:[%s1964 + $0x3c] sm:$0xf]
        %v2158 = vld [vmem:[%s1964 + $0x40] sm:$0xf]
        %v2159 = vld [vmem:[%s1964 + $0x44] sm:$0x1]
        %v2160 = vld [vmem:[%s1964 + $0x48] sm:$0xf]
        %v2161 = vld [vmem:[%s1964 + $0x4c] sm:$0xf]
        %v2162 = vld [vmem:[%s1964 + $0x50] sm:$0x1]
        %v2163 = vld [vmem:[%s1964 + $0x54] sm:$0xf]
        %v2164 = vld [vmem:[%s1964 + $0x58] sm:$0xf]
        %v2165 = vld [vmem:[%s1964 + $0x5c] sm:$0x1]
        %v2166 = vld [vmem:[%s1964 + $0x60] sm:$0xf]
        %v2167 = vld [vmem:[%s1964 + $0x64] sm:$0xf]
        %v2168 = vld [vmem:[%s1964 + $0x68] sm:$0x1]
        %v2169 = vld [vmem:[%s1964 + $0x6c] sm:$0xf]
        %v2170 = vld [vmem:[%s1964 + $0x70] sm:$0xf]
        %v2171 = vld [vmem:[%s1964 + $0x74] sm:$0x1]
        %v2172 = vld [vmem:[%s1964 + $0x78] sm:$0xf]
        %v2173 = vld [vmem:[%s1964 + $0x7c] sm:$0xf]
        %v2174 = vld [vmem:[%s1964 + $0x80] sm:$0x1]
        %v2175 = vld [vmem:[%s1964 + $0x84] sm:$0xf]
        %v2176 = vld [vmem:[%s1964 + $0x88] sm:$0xf]
        %v2177 = vld [vmem:[%s1964 + $0x8c] sm:$0x1]
        %v2178 = vld [vmem:[%s1964 + $0x90] sm:$0xf]
        %v2179 = vld [vmem:[%s1964 + $0x94] sm:$0xf]
        %v2180 = vld [vmem:[%s1964 + $0x98] sm:$0x1]
        %v2181 = vld [vmem:[%s1964 + $0x9c] sm:$0xf]
        %v2182 = vld [vmem:[%s1964 + $0xa0] sm:$0xf]
        %v2183 = vld [vmem:[%s1964 + $0xa4] sm:$0x1]
        %v2184 = vld [vmem:[%s1964 + $0xa8] sm:$0xf]
        %v2185 = vld [vmem:[%s1964 + $0xac] sm:$0xf]
        %v2186 = vld [vmem:[%s1964 + $0xb0] sm:$0x1]
        %v2187 = vld [vmem:[%s1964 + $0xb4] sm:$0xf]
        %v2188 = vld [vmem:[%s1964 + $0xb8] sm:$0xf]
        %v2189 = vld [vmem:[%s1964 + $0xbc] sm:$0x1]
        %v2238 = vunpack.c.l.b16 %v2142
        %v2239 = vunpack.c.l.b16 %v2143
        %v2240 = vunpack.c.l.b16 %v2144
        %v2241 = vunpack.c.l.b16 %v2145
        %v2242 = vunpack.c.l.b16 %v2146
        %v2243 = vunpack.c.l.b16 %v2147
        %v2244 = vunpack.c.l.b16 %v2148
        %v2245 = vunpack.c.l.b16 %v2149
        %v2246 = vunpack.c.l.b16 %v2150
        %v2247 = vunpack.c.l.b16 %v2151
        %v2248 = vunpack.c.l.b16 %v2152
        %v2249 = vunpack.c.l.b16 %v2153
        %v2250 = vunpack.c.l.b16 %v2154
        %v2251 = vunpack.c.l.b16 %v2155
        %v2252 = vunpack.c.l.b16 %v2156
        %v2253 = vunpack.c.l.b16 %v2157
        %v2254 = vunpack.c.l.b16 %v2158
        %v2255 = vunpack.c.l.b16 %v2159
        %v2256 = vunpack.c.l.b16 %v2160
        %v2257 = vunpack.c.l.b16 %v2161
        %v2258 = vunpack.c.l.b16 %v2162
        %v2259 = vunpack.c.l.b16 %v2163
        %v2260 = vunpack.c.l.b16 %v2164
        %v2261 = vunpack.c.l.b16 %v2165
        %v2262 = vunpack.c.l.b16 %v2166
        %v2263 = vunpack.c.l.b16 %v2167
        %v2264 = vunpack.c.l.b16 %v2168
        %v2265 = vunpack.c.l.b16 %v2169
        %v2266 = vunpack.c.l.b16 %v2170
        %v2267 = vunpack.c.l.b16 %v2171
        %v2268 = vunpack.c.l.b16 %v2172
        %v2269 = vunpack.c.l.b16 %v2173
        %v2270 = vunpack.c.l.b16 %v2174
        %v2271 = vunpack.c.l.b16 %v2175
        %v2272 = vunpack.c.l.b16 %v2176
        %v2273 = vunpack.c.l.b16 %v2177
        %v2274 = vunpack.c.l.b16 %v2178
        %v2275 = vunpack.c.l.b16 %v2179
        %v2276 = vunpack.c.l.b16 %v2180
        %v2277 = vunpack.c.l.b16 %v2181
        %v2278 = vunpack.c.l.b16 %v2182
        %v2279 = vunpack.c.l.b16 %v2183
        %v2280 = vunpack.c.l.b16 %v2184
        %v2281 = vunpack.c.l.b16 %v2185
        %v2282 = vunpack.c.l.b16 %v2186
        %v2283 = vunpack.c.l.b16 %v2187
        %v2284 = vunpack.c.l.b16 %v2188
        %v2285 = vunpack.c.l.b16 %v2189
        %v2286 = vpack.c.b16 %v2239, %v2238
        %v2287 = vpack.c.b16 %v2240, %v2240
        %v2288 = vpack.c.b16 %v2242, %v2241
        %v2289 = vpack.c.b16 %v2243, %v2243
        %v2290 = vpack.c.b16 %v2245, %v2244
        %v2291 = vpack.c.b16 %v2246, %v2246
        %v2292 = vpack.c.b16 %v2248, %v2247
        %v2293 = vpack.c.b16 %v2249, %v2249
        %v2294 = vpack.c.b16 %v2251, %v2250
        %v2295 = vpack.c.b16 %v2252, %v2252
        %v2296 = vpack.c.b16 %v2254, %v2253
        %v2297 = vpack.c.b16 %v2255, %v2255
        %v2298 = vpack.c.b16 %v2257, %v2256
        %v2299 = vpack.c.b16 %v2258, %v2258
        %v2300 = vpack.c.b16 %v2260, %v2259
        %v2301 = vpack.c.b16 %v2261, %v2261
        %v2302 = vpack.c.b16 %v2263, %v2262
        %v2303 = vpack.c.b16 %v2264, %v2264
        %v2304 = vpack.c.b16 %v2266, %v2265
        %v2305 = vpack.c.b16 %v2267, %v2267
        %v2306 = vpack.c.b16 %v2269, %v2268
        %v2307 = vpack.c.b16 %v2270, %v2270
        %v2308 = vpack.c.b16 %v2272, %v2271
        %v2309 = vpack.c.b16 %v2273, %v2273
        %v2310 = vpack.c.b16 %v2275, %v2274
        %v2311 = vpack.c.b16 %v2276, %v2276
        %v2312 = vpack.c.b16 %v2278, %v2277
        %v2313 = vpack.c.b16 %v2279, %v2279
        %v2314 = vpack.c.b16 %v2281, %v2280
        %v2315 = vpack.c.b16 %v2282, %v2282
        %v2316 = vpack.c.b16 %v2284, %v2283
        %v2317 = vpack.c.b16 %v2285, %v2285
        %v2319 = vshrl.u32 %v2286, 16
        %v2321 = vshll.u32 %v2286, 16
        %v2323 = vrot.slane %v2321, 1
        %v2324 = vor.u32 %v2319, %v2323
        %v2326 = vshll.u32 %v2287, 16
        %v2328 = vrot.slane %v2326, 1
        %v2329 = vsel %vm510, %v2324, %v2328
        %v2331 = vshrl.u32 %v2288, 16
        %v2333 = vshll.u32 %v2288, 16
        %v2335 = vrot.slane %v2333, 1
        %v2336 = vor.u32 %v2331, %v2335
        %v2338 = vshll.u32 %v2289, 16
        %v2340 = vrot.slane %v2338, 1
        %v2341 = vsel %vm510, %v2336, %v2340
        %v2343 = vshrl.u32 %v2290, 16
        %v2345 = vshll.u32 %v2290, 16
        %v2347 = vrot.slane %v2345, 1
        %v2348 = vor.u32 %v2343, %v2347
        %v2350 = vshll.u32 %v2291, 16
        %v2352 = vrot.slane %v2350, 1
        %v2353 = vsel %vm510, %v2348, %v2352
        %v2355 = vshrl.u32 %v2292, 16
        %v2357 = vshll.u32 %v2292, 16
        %v2359 = vrot.slane %v2357, 1
        %v2360 = vor.u32 %v2355, %v2359
        %v2362 = vshll.u32 %v2293, 16
        %v2364 = vrot.slane %v2362, 1
        %v2365 = vsel %vm510, %v2360, %v2364
        %v2367 = vshrl.u32 %v2294, 16
        %v2369 = vshll.u32 %v2294, 16
        %v2371 = vrot.slane %v2369, 1
        %v2372 = vor.u32 %v2367, %v2371
        %v2374 = vshll.u32 %v2295, 16
        %v2376 = vrot.slane %v2374, 1
        %v2377 = vsel %vm510, %v2372, %v2376
        %v2379 = vshrl.u32 %v2296, 16
        %v2381 = vshll.u32 %v2296, 16
        %v2383 = vrot.slane %v2381, 1
        %v2384 = vor.u32 %v2379, %v2383
        %v2386 = vshll.u32 %v2297, 16
        %v2388 = vrot.slane %v2386, 1
        %v2389 = vsel %vm510, %v2384, %v2388
        %v2391 = vshrl.u32 %v2298, 16
        %v2393 = vshll.u32 %v2298, 16
        %v2395 = vrot.slane %v2393, 1
        %v2396 = vor.u32 %v2391, %v2395
        %v2398 = vshll.u32 %v2299, 16
        %v2400 = vrot.slane %v2398, 1
        %v2401 = vsel %vm510, %v2396, %v2400
        %v2403 = vshrl.u32 %v2300, 16
        %v2405 = vshll.u32 %v2300, 16
        %v2407 = vrot.slane %v2405, 1
        %v2408 = vor.u32 %v2403, %v2407
        %v2410 = vshll.u32 %v2301, 16
        %v2412 = vrot.slane %v2410, 1
        %v2413 = vsel %vm510, %v2408, %v2412
        %v2415 = vshrl.u32 %v2302, 16
        %v2417 = vshll.u32 %v2302, 16
        %v2419 = vrot.slane %v2417, 1
        %v2420 = vor.u32 %v2415, %v2419
        %v2422 = vshll.u32 %v2303, 16
        %v2424 = vrot.slane %v2422, 1
        %v2425 = vsel %vm510, %v2420, %v2424
        %v2427 = vshrl.u32 %v2304, 16
        %v2429 = vshll.u32 %v2304, 16
        %v2431 = vrot.slane %v2429, 1
        %v2432 = vor.u32 %v2427, %v2431
        %v2434 = vshll.u32 %v2305, 16
        %v2436 = vrot.slane %v2434, 1
        %v2437 = vsel %vm510, %v2432, %v2436
        %v2439 = vshrl.u32 %v2306, 16
        %v2441 = vshll.u32 %v2306, 16
        %v2443 = vrot.slane %v2441, 1
        %v2444 = vor.u32 %v2439, %v2443
        %v2446 = vshll.u32 %v2307, 16
        %v2448 = vrot.slane %v2446, 1
        %v2449 = vsel %vm510, %v2444, %v2448
        %v2451 = vshrl.u32 %v2308, 16
        %v2453 = vshll.u32 %v2308, 16
        %v2455 = vrot.slane %v2453, 1
        %v2456 = vor.u32 %v2451, %v2455
        %v2458 = vshll.u32 %v2309, 16
        %v2460 = vrot.slane %v2458, 1
        %v2461 = vsel %vm510, %v2456, %v2460
        %v2463 = vshrl.u32 %v2310, 16
        %v2465 = vshll.u32 %v2310, 16
        %v2467 = vrot.slane %v2465, 1
        %v2468 = vor.u32 %v2463, %v2467
        %v2470 = vshll.u32 %v2311, 16
        %v2472 = vrot.slane %v2470, 1
        %v2473 = vsel %vm510, %v2468, %v2472
        %v2475 = vshrl.u32 %v2312, 16
        %v2477 = vshll.u32 %v2312, 16
        %v2479 = vrot.slane %v2477, 1
        %v2480 = vor.u32 %v2475, %v2479
        %v2482 = vshll.u32 %v2313, 16
        %v2484 = vrot.slane %v2482, 1
        %v2485 = vsel %vm510, %v2480, %v2484
        %v2487 = vshrl.u32 %v2314, 16
        %v2489 = vshll.u32 %v2314, 16
        %v2491 = vrot.slane %v2489, 1
        %v2492 = vor.u32 %v2487, %v2491
        %v2494 = vshll.u32 %v2315, 16
        %v2496 = vrot.slane %v2494, 1
        %v2497 = vsel %vm510, %v2492, %v2496
        %v2499 = vshrl.u32 %v2316, 16
        %v2501 = vshll.u32 %v2316, 16
        %v2503 = vrot.slane %v2501, 1
        %v2504 = vor.u32 %v2499, %v2503
        %v2506 = vshll.u32 %v2317, 16
        %v2508 = vrot.slane %v2506, 1
        %v2509 = vsel %vm510, %v2504, %v2508
        %2510 = vrot.lane.b32.xlu0 %v2329, 28
        %v2511 = vpop.permute.xlu0 %2510
        %2512 = vrot.lane.b32.xlu0 %v2341, 28
        %v2513 = vpop.permute.xlu0 %2512
        %2514 = vrot.lane.b32.xlu0 %v2353, 28
        %v2515 = vpop.permute.xlu0 %2514
        %2516 = vrot.lane.b32.xlu0 %v2365, 28
        %v2517 = vpop.permute.xlu0 %2516
        %2518 = vrot.lane.b32.xlu0 %v2377, 28
        %v2519 = vpop.permute.xlu0 %2518
        %2520 = vrot.lane.b32.xlu0 %v2389, 28
        %v2521 = vpop.permute.xlu0 %2520
        %2522 = vrot.lane.b32.xlu0 %v2401, 28
        %v2523 = vpop.permute.xlu0 %2522
        %2524 = vrot.lane.b32.xlu0 %v2413, 28
        %v2525 = vpop.permute.xlu0 %2524
        %2526 = vrot.lane.b32.xlu0 %v2425, 28
        %v2527 = vpop.permute.xlu0 %2526
        %2528 = vrot.lane.b32.xlu0 %v2437, 28
        %v2529 = vpop.permute.xlu0 %2528
        %2530 = vrot.lane.b32.xlu0 %v2449, 28
        %v2531 = vpop.permute.xlu0 %2530
        %2532 = vrot.lane.b32.xlu0 %v2461, 28
        %v2533 = vpop.permute.xlu0 %2532
        %2534 = vrot.lane.b32.xlu0 %v2473, 28
        %v2535 = vpop.permute.xlu0 %2534
        %2536 = vrot.lane.b32.xlu0 %v2485, 28
        %v2537 = vpop.permute.xlu0 %2536
        %2538 = vrot.lane.b32.xlu0 %v2497, 28
        %v2539 = vpop.permute.xlu0 %2538
        %2540 = vrot.lane.b32.xlu0 %v2509, 28
        %v2541 = vpop.permute.xlu0 %2540
        %vm2558 = vcmask 261344
        %2559 = vst.msk [vmem:[#allocation2] sm:$0xff] %vm2558, %v2511
        %2560 = vst.msk [vmem:[#allocation2 + $0x8] sm:$0xff] %vm2558, %v2513
        %2561 = vst.msk [vmem:[#allocation2 + $0x10] sm:$0xff] %vm2558, %v2515
        %2562 = vst.msk [vmem:[#allocation2 + $0x18] sm:$0xff] %vm2558, %v2517
        %2563 = vst.msk [vmem:[#allocation2 + $0x20] sm:$0xff] %vm2558, %v2519
        %2564 = vst.msk [vmem:[#allocation2 + $0x28] sm:$0xff] %vm2558, %v2521
        %2565 = vst.msk [vmem:[#allocation2 + $0x30] sm:$0xff] %vm2558, %v2523
        %2566 = vst.msk [vmem:[#allocation2 + $0x38] sm:$0xff] %vm2558, %v2525
        %2567 = vst.msk [vmem:[#allocation2 + $0x40] sm:$0xff] %vm2558, %v2527
        %2568 = vst.msk [vmem:[#allocation2 + $0x48] sm:$0xff] %vm2558, %v2529
        %2569 = vst.msk [vmem:[#allocation2 + $0x50] sm:$0xff] %vm2558, %v2531
        %2570 = vst.msk [vmem:[#allocation2 + $0x58] sm:$0xff] %vm2558, %v2533
        %2571 = vst.msk [vmem:[#allocation2 + $0x60] sm:$0xff] %vm2558, %v2535
        %2572 = vst.msk [vmem:[#allocation2 + $0x68] sm:$0xff] %vm2558, %v2537
        %2573 = vst.msk [vmem:[#allocation2 + $0x70] sm:$0xff] %vm2558, %v2539
        %2574 = vst.msk [vmem:[#allocation2 + $0x78] sm:$0xff] %vm2558, %v2541
        %v2575 = vld [vmem:[%s1964] sm:$0xe]
        %v2576 = vld [vmem:[%s1964 + $0x4] sm:$0xf]
        %v2577 = vld [vmem:[%s1964 + $0x8] sm:$0x1]
        %v2578 = vld [vmem:[%s1964 + $0xc] sm:$0xe]
        %v2579 = vld [vmem:[%s1964 + $0x10] sm:$0xf]
        %v2580 = vld [vmem:[%s1964 + $0x14] sm:$0x1]
        %v2581 = vld [vmem:[%s1964 + $0x18] sm:$0xe]
        %v2582 = vld [vmem:[%s1964 + $0x1c] sm:$0xf]
        %v2583 = vld [vmem:[%s1964 + $0x20] sm:$0x1]
        %v2584 = vld [vmem:[%s1964 + $0x24] sm:$0xe]
        %v2585 = vld [vmem:[%s1964 + $0x28] sm:$0xf]
        %v2586 = vld [vmem:[%s1964 + $0x2c] sm:$0x1]
        %v2587 = vld [vmem:[%s1964 + $0x30] sm:$0xe]
        %v2588 = vld [vmem:[%s1964 + $0x34] sm:$0xf]
        %v2589 = vld [vmem:[%s1964 + $0x38] sm:$0x1]
        %v2590 = vld [vmem:[%s1964 + $0x3c] sm:$0xe]
        %v2591 = vld [vmem:[%s1964 + $0x40] sm:$0xf]
        %v2592 = vld [vmem:[%s1964 + $0x44] sm:$0x1]
        %v2593 = vld [vmem:[%s1964 + $0x48] sm:$0xe]
        %v2594 = vld [vmem:[%s1964 + $0x4c] sm:$0xf]
        %v2595 = vld [vmem:[%s1964 + $0x50] sm:$0x1]
        %v2596 = vld [vmem:[%s1964 + $0x54] sm:$0xe]
        %v2597 = vld [vmem:[%s1964 + $0x58] sm:$0xf]
        %v2598 = vld [vmem:[%s1964 + $0x5c] sm:$0x1]
        %v2599 = vld [vmem:[%s1964 + $0x60] sm:$0xe]
        %v2600 = vld [vmem:[%s1964 + $0x64] sm:$0xf]
        %v2601 = vld [vmem:[%s1964 + $0x68] sm:$0x1]
        %v2602 = vld [vmem:[%s1964 + $0x6c] sm:$0xe]
        %v2603 = vld [vmem:[%s1964 + $0x70] sm:$0xf]
        %v2604 = vld [vmem:[%s1964 + $0x74] sm:$0x1]
        %v2605 = vld [vmem:[%s1964 + $0x78] sm:$0xe]
        %v2606 = vld [vmem:[%s1964 + $0x7c] sm:$0xf]
        %v2607 = vld [vmem:[%s1964 + $0x80] sm:$0x1]
        %v2608 = vld [vmem:[%s1964 + $0x84] sm:$0xe]
        %v2609 = vld [vmem:[%s1964 + $0x88] sm:$0xf]
        %v2610 = vld [vmem:[%s1964 + $0x8c] sm:$0x1]
        %v2611 = vld [vmem:[%s1964 + $0x90] sm:$0xe]
        %v2612 = vld [vmem:[%s1964 + $0x94] sm:$0xf]
        %v2613 = vld [vmem:[%s1964 + $0x98] sm:$0x1]
        %v2614 = vld [vmem:[%s1964 + $0x9c] sm:$0xe]
        %v2615 = vld [vmem:[%s1964 + $0xa0] sm:$0xf]
        %v2616 = vld [vmem:[%s1964 + $0xa4] sm:$0x1]
        %v2617 = vld [vmem:[%s1964 + $0xa8] sm:$0xe]
        %v2618 = vld [vmem:[%s1964 + $0xac] sm:$0xf]
        %v2619 = vld [vmem:[%s1964 + $0xb0] sm:$0x1]
        %v2620 = vld [vmem:[%s1964 + $0xb4] sm:$0xe]
        %v2621 = vld [vmem:[%s1964 + $0xb8] sm:$0xf]
        %v2622 = vld [vmem:[%s1964 + $0xbc] sm:$0x1]
        %v2671 = vunpack.c.l.b16 %v2575
        %v2672 = vunpack.c.l.b16 %v2576
        %v2673 = vunpack.c.l.b16 %v2577
        %v2674 = vunpack.c.l.b16 %v2578
        %v2675 = vunpack.c.l.b16 %v2579
        %v2676 = vunpack.c.l.b16 %v2580
        %v2677 = vunpack.c.l.b16 %v2581
        %v2678 = vunpack.c.l.b16 %v2582
        %v2679 = vunpack.c.l.b16 %v2583
        %v2680 = vunpack.c.l.b16 %v2584
        %v2681 = vunpack.c.l.b16 %v2585
        %v2682 = vunpack.c.l.b16 %v2586
        %v2683 = vunpack.c.l.b16 %v2587
        %v2684 = vunpack.c.l.b16 %v2588
        %v2685 = vunpack.c.l.b16 %v2589
        %v2686 = vunpack.c.l.b16 %v2590
        %v2687 = vunpack.c.l.b16 %v2591
        %v2688 = vunpack.c.l.b16 %v2592
        %v2689 = vunpack.c.l.b16 %v2593
        %v2690 = vunpack.c.l.b16 %v2594
        %v2691 = vunpack.c.l.b16 %v2595
        %v2692 = vunpack.c.l.b16 %v2596
        %v2693 = vunpack.c.l.b16 %v2597
        %v2694 = vunpack.c.l.b16 %v2598
        %v2695 = vunpack.c.l.b16 %v2599
        %v2696 = vunpack.c.l.b16 %v2600
        %v2697 = vunpack.c.l.b16 %v2601
        %v2698 = vunpack.c.l.b16 %v2602
        %v2699 = vunpack.c.l.b16 %v2603
        %v2700 = vunpack.c.l.b16 %v2604
        %v2701 = vunpack.c.l.b16 %v2605
        %v2702 = vunpack.c.l.b16 %v2606
        %v2703 = vunpack.c.l.b16 %v2607
        %v2704 = vunpack.c.l.b16 %v2608
        %v2705 = vunpack.c.l.b16 %v2609
        %v2706 = vunpack.c.l.b16 %v2610
        %v2707 = vunpack.c.l.b16 %v2611
        %v2708 = vunpack.c.l.b16 %v2612
        %v2709 = vunpack.c.l.b16 %v2613
        %v2710 = vunpack.c.l.b16 %v2614
        %v2711 = vunpack.c.l.b16 %v2615
        %v2712 = vunpack.c.l.b16 %v2616
        %v2713 = vunpack.c.l.b16 %v2617
        %v2714 = vunpack.c.l.b16 %v2618
        %v2715 = vunpack.c.l.b16 %v2619
        %v2716 = vunpack.c.l.b16 %v2620
        %v2717 = vunpack.c.l.b16 %v2621
        %v2718 = vunpack.c.l.b16 %v2622
        %v2719 = vpack.c.b16 %v2672, %v2671
        %v2720 = vpack.c.b16 %v2673, %v2673
        %v2721 = vpack.c.b16 %v2675, %v2674
        %v2722 = vpack.c.b16 %v2676, %v2676
        %v2723 = vpack.c.b16 %v2678, %v2677
        %v2724 = vpack.c.b16 %v2679, %v2679
        %v2725 = vpack.c.b16 %v2681, %v2680
        %v2726 = vpack.c.b16 %v2682, %v2682
        %v2727 = vpack.c.b16 %v2684, %v2683
        %v2728 = vpack.c.b16 %v2685, %v2685
        %v2729 = vpack.c.b16 %v2687, %v2686
        %v2730 = vpack.c.b16 %v2688, %v2688
        %v2731 = vpack.c.b16 %v2690, %v2689
        %v2732 = vpack.c.b16 %v2691, %v2691
        %v2733 = vpack.c.b16 %v2693, %v2692
        %v2734 = vpack.c.b16 %v2694, %v2694
        %v2735 = vpack.c.b16 %v2696, %v2695
        %v2736 = vpack.c.b16 %v2697, %v2697
        %v2737 = vpack.c.b16 %v2699, %v2698
        %v2738 = vpack.c.b16 %v2700, %v2700
        %v2739 = vpack.c.b16 %v2702, %v2701
        %v2740 = vpack.c.b16 %v2703, %v2703
        %v2741 = vpack.c.b16 %v2705, %v2704
        %v2742 = vpack.c.b16 %v2706, %v2706
        %v2743 = vpack.c.b16 %v2708, %v2707
        %v2744 = vpack.c.b16 %v2709, %v2709
        %v2745 = vpack.c.b16 %v2711, %v2710
        %v2746 = vpack.c.b16 %v2712, %v2712
        %v2747 = vpack.c.b16 %v2714, %v2713
        %v2748 = vpack.c.b16 %v2715, %v2715
        %v2749 = vpack.c.b16 %v2717, %v2716
        %v2750 = vpack.c.b16 %v2718, %v2718
        %v2751 = vrot.slane %v2719, 1
        %v2752 = vrot.slane %v2720, 1
        %v2753 = vsel %vm944, %v2751, %v2752
        %v2754 = vrot.slane %v2721, 1
        %v2755 = vrot.slane %v2722, 1
        %v2756 = vsel %vm944, %v2754, %v2755
        %v2757 = vrot.slane %v2723, 1
        %v2758 = vrot.slane %v2724, 1
        %v2759 = vsel %vm944, %v2757, %v2758
        %v2760 = vrot.slane %v2725, 1
        %v2761 = vrot.slane %v2726, 1
        %v2762 = vsel %vm944, %v2760, %v2761
        %v2763 = vrot.slane %v2727, 1
        %v2764 = vrot.slane %v2728, 1
        %v2765 = vsel %vm944, %v2763, %v2764
        %v2766 = vrot.slane %v2729, 1
        %v2767 = vrot.slane %v2730, 1
        %v2768 = vsel %vm944, %v2766, %v2767
        %v2769 = vrot.slane %v2731, 1
        %v2770 = vrot.slane %v2732, 1
        %v2771 = vsel %vm944, %v2769, %v2770
        %v2772 = vrot.slane %v2733, 1
        %v2773 = vrot.slane %v2734, 1
        %v2774 = vsel %vm944, %v2772, %v2773
        %v2775 = vrot.slane %v2735, 1
        %v2776 = vrot.slane %v2736, 1
        %v2777 = vsel %vm944, %v2775, %v2776
        %v2778 = vrot.slane %v2737, 1
        %v2779 = vrot.slane %v2738, 1
        %v2780 = vsel %vm944, %v2778, %v2779
        %v2781 = vrot.slane %v2739, 1
        %v2782 = vrot.slane %v2740, 1
        %v2783 = vsel %vm944, %v2781, %v2782
        %v2784 = vrot.slane %v2741, 1
        %v2785 = vrot.slane %v2742, 1
        %v2786 = vsel %vm944, %v2784, %v2785
        %v2787 = vrot.slane %v2743, 1
        %v2788 = vrot.slane %v2744, 1
        %v2789 = vsel %vm944, %v2787, %v2788
        %v2790 = vrot.slane %v2745, 1
        %v2791 = vrot.slane %v2746, 1
        %v2792 = vsel %vm944, %v2790, %v2791
        %v2793 = vrot.slane %v2747, 1
        %v2794 = vrot.slane %v2748, 1
        %v2795 = vsel %vm944, %v2793, %v2794
        %v2796 = vrot.slane %v2749, 1
        %v2797 = vrot.slane %v2750, 1
        %v2798 = vsel %vm944, %v2796, %v2797
        %2799 = vrot.lane.b32.xlu0 %v2753, 32
        %v2800 = vpop.permute.xlu0 %2799
        %2801 = vrot.lane.b32.xlu0 %v2756, 32
        %v2802 = vpop.permute.xlu0 %2801
        %2803 = vrot.lane.b32.xlu0 %v2759, 32
        %v2804 = vpop.permute.xlu0 %2803
        %2805 = vrot.lane.b32.xlu0 %v2762, 32
        %v2806 = vpop.permute.xlu0 %2805
        %2807 = vrot.lane.b32.xlu0 %v2765, 32
        %v2808 = vpop.permute.xlu0 %2807
        %2809 = vrot.lane.b32.xlu0 %v2768, 32
        %v2810 = vpop.permute.xlu0 %2809
        %2811 = vrot.lane.b32.xlu0 %v2771, 32
        %v2812 = vpop.permute.xlu0 %2811
        %2813 = vrot.lane.b32.xlu0 %v2774, 32
        %v2814 = vpop.permute.xlu0 %2813
        %2815 = vrot.lane.b32.xlu0 %v2777, 32
        %v2816 = vpop.permute.xlu0 %2815
        %2817 = vrot.lane.b32.xlu0 %v2780, 32
        %v2818 = vpop.permute.xlu0 %2817
        %2819 = vrot.lane.b32.xlu0 %v2783, 32
        %v2820 = vpop.permute.xlu0 %2819
        %2821 = vrot.lane.b32.xlu0 %v2786, 32
        %v2822 = vpop.permute.xlu0 %2821
        %2823 = vrot.lane.b32.xlu0 %v2789, 32
        %v2824 = vpop.permute.xlu0 %2823
        %2825 = vrot.lane.b32.xlu0 %v2792, 32
        %v2826 = vpop.permute.xlu0 %2825
        %2827 = vrot.lane.b32.xlu0 %v2795, 32
        %v2828 = vpop.permute.xlu0 %2827
        %2829 = vrot.lane.b32.xlu0 %v2798, 32
        %v2830 = vpop.permute.xlu0 %2829
        %vm2847 = vcmask 294144
        %2848 = vst.msk [vmem:[#allocation2] sm:$0xff] %vm2847, %v2800
        %2849 = vst.msk [vmem:[#allocation2 + $0x8] sm:$0xff] %vm2847, %v2802
        %2850 = vst.msk [vmem:[#allocation2 + $0x10] sm:$0xff] %vm2847, %v2804
        %2851 = vst.msk [vmem:[#allocation2 + $0x18] sm:$0xff] %vm2847, %v2806
        %2852 = vst.msk [vmem:[#allocation2 + $0x20] sm:$0xff] %vm2847, %v2808
        %2853 = vst.msk [vmem:[#allocation2 + $0x28] sm:$0xff] %vm2847, %v2810
        %2854 = vst.msk [vmem:[#allocation2 + $0x30] sm:$0xff] %vm2847, %v2812
        %2855 = vst.msk [vmem:[#allocation2 + $0x38] sm:$0xff] %vm2847, %v2814
        %2856 = vst.msk [vmem:[#allocation2 + $0x40] sm:$0xff] %vm2847, %v2816
        %2857 = vst.msk [vmem:[#allocation2 + $0x48] sm:$0xff] %vm2847, %v2818
        %2858 = vst.msk [vmem:[#allocation2 + $0x50] sm:$0xff] %vm2847, %v2820
        %2859 = vst.msk [vmem:[#allocation2 + $0x58] sm:$0xff] %vm2847, %v2822
        %2860 = vst.msk [vmem:[#allocation2 + $0x60] sm:$0xff] %vm2847, %v2824
        %2861 = vst.msk [vmem:[#allocation2 + $0x68] sm:$0xff] %vm2847, %v2826
        %2862 = vst.msk [vmem:[#allocation2 + $0x70] sm:$0xff] %vm2847, %v2828
        %2863 = vst.msk [vmem:[#allocation2 + $0x78] sm:$0xff] %vm2847, %v2830
        %v2864 = vld [vmem:[#allocation2] sm:$0xff]
        %v2865 = vld [vmem:[#allocation2 + $0x8] sm:$0xff]
        %v2866 = vld [vmem:[#allocation2 + $0x10] sm:$0xff]
        %v2867 = vld [vmem:[#allocation2 + $0x18] sm:$0xff]
        %v2868 = vld [vmem:[#allocation2 + $0x20] sm:$0xff]
        %v2869 = vld [vmem:[#allocation2 + $0x28] sm:$0xff]
        %v2870 = vld [vmem:[#allocation2 + $0x30] sm:$0xff]
        %v2871 = vld [vmem:[#allocation2 + $0x38] sm:$0xff]
        %v2872 = vld [vmem:[#allocation2 + $0x40] sm:$0xff]
        %v2873 = vld [vmem:[#allocation2 + $0x48] sm:$0xff]
        %v2874 = vld [vmem:[#allocation2 + $0x50] sm:$0xff]
        %v2875 = vld [vmem:[#allocation2 + $0x58] sm:$0xff]
        %v2876 = vld [vmem:[#allocation2 + $0x60] sm:$0xff]
        %v2877 = vld [vmem:[#allocation2 + $0x68] sm:$0xff]
        %v2878 = vld [vmem:[#allocation2 + $0x70] sm:$0xff]
        %v2879 = vld [vmem:[#allocation2 + $0x78] sm:$0xff]
        %v2880 = vld [vmem:[%s1] sm:$0xf]
        %v2881 = vld [vmem:[%s2] sm:$0xff]
        %2883 = vset.pattern.permute.xlu0 0
        %2884 = vperm.xlu0 %2883, %v2881
        %v2885 = vpop.permute.xlu0 %2884
        %vm2887 = vcmask 293888
        %v2889 = vsel %vm2887, %v2880, 0
        %v2892 = vsel %vm2887, %v2864, 0
        %v2895 = vsel %vm2887, %v2865, 0
        %v2898 = vsel %vm2887, %v2866, 0
        %v2901 = vsel %vm2887, %v2867, 0
        %v2904 = vsel %vm2887, %v2868, 0
        %v2907 = vsel %vm2887, %v2869, 0
        %v2910 = vsel %vm2887, %v2870, 0
        %v2913 = vsel %vm2887, %v2871, 0
        %v2916 = vsel %vm2887, %v2872, 0
        %v2919 = vsel %vm2887, %v2873, 0
        %v2922 = vsel %vm2887, %v2874, 0
        %v2925 = vsel %vm2887, %v2875, 0
        %v2928 = vsel %vm2887, %v2876, 0
        %v2931 = vsel %vm2887, %v2877, 0
        %v2934 = vsel %vm2887, %v2878, 0
        %v2937 = vsel %vm2887, %v2879, 0
        %2939 = vmatprep.subr.bf16.mxu0 0
        %2940 = vmatpush1.bf16.xpose.msra.mxu0 %v2892
        %2941 = vmatprep.subr.bf16.mxu0 0
        %2942 = vmatpush1.bf16.xpose.msra.mxu0 %v2895
        %2943 = vmatprep.subr.bf16.mxu0 0
        %2944 = vmatpush1.bf16.xpose.msra.mxu0 %v2898
        %2945 = vmatprep.subr.bf16.mxu0 0
        %2946 = vmatpush1.bf16.xpose.msra.mxu0 %v2901
        %2947 = vmatprep.subr.bf16.mxu0 0
        %2948 = vmatpush1.bf16.xpose.msra.mxu0 %v2904
        %2949 = vmatprep.subr.bf16.mxu0 0
        %2950 = vmatpush1.bf16.xpose.msra.mxu0 %v2907
        %2951 = vmatprep.subr.bf16.mxu0 0
        %2952 = vmatpush1.bf16.xpose.msra.mxu0 %v2910
        %2953 = vmatprep.subr.bf16.mxu0 0
        %2954 = vmatpush1.bf16.xpose.msra.mxu0 %v2913
        %2955 = vmatprep.subr.bf16.mxu0 0
        %2956 = vmatpush1.bf16.xpose.msra.mxu0 %v2916
        %2957 = vmatprep.subr.bf16.mxu0 0
        %2958 = vmatpush1.bf16.xpose.msra.mxu0 %v2919
        %2959 = vmatprep.subr.bf16.mxu0 0
        %2960 = vmatpush1.bf16.xpose.msra.mxu0 %v2922
        %2961 = vmatprep.subr.bf16.mxu0 0
        %2962 = vmatpush1.bf16.xpose.msra.mxu0 %v2925
        %2963 = vmatprep.subr.bf16.mxu0 0
        %2964 = vmatpush1.bf16.xpose.msra.mxu0 %v2928
        %2965 = vmatprep.subr.bf16.mxu0 0
        %2966 = vmatpush1.bf16.xpose.msra.mxu0 %v2931
        %2967 = vmatprep.subr.bf16.mxu0 0
        %2968 = vmatpush1.bf16.xpose.msra.mxu0 %v2934
        %2969 = vmatprep.subr.bf16.mxu0 0
        %2970 = vmatpush1.bf16.xpose.msra.mxu0 %v2937
        %2971 = vmatprep.mubr.bf16.mxu0 0
        %2972 = vmatmul.mubr.bf16.gmra.mrb[0].mxu0 %v2889
        %v2973 = vpop.f32.mrb[0].mxu0
        %v2974 = vadd.f32 %v2885, %v2973
        %v2975 = vpop.f32.mrb[0].mxu0
        %v2976 = vadd.f32 %v2885, %v2975
        %v2977 = vpop.f32.mrb[0].mxu0
        %v2978 = vpop.f32.mrb[0].mxu0
        %2979 = vdwg.mxu0
        %2980 = vst [vmem:[%s177] sm:$0xff] %v2974
        %2981 = vst [vmem:[%s177 + $0x8] sm:$0xff] %v2976
        %s2982 = sand.u32 %s107, 1
        %s2983 = scalar_lea.sflag [#allocation4], %s2982
        %s2984 = sand.u32 %s107, 1
        %s2985 = smul.addr %s2984, 16
        %s2986 = scalar_lea.vmem [#allocation3], %s2985
        // Predicated region
        $region33: #{tpu_custom_call.1} parent=31 // pred_check
          %p2987 = pneg %p117
        $region34: #{tpu_custom_call.1} parent=31 // pred_check_branch
          %2989 = sbr.rel (%p2987) target = $region36
        $region35: #{tpu_custom_call.1} parent=31 // pred_region
          %s2990 = smul.u32 2, %s22
          %s2992 = ssub.s32 256, 256
          %2993 = vsyncadd %s2983, %s2992
          %s2994 = smul.addr %s21, 2
          %s2995 = sadd.s32 %s2990, %s2994
          %s2996 = smul.addr %s2995, 128
          %s2997 = scalar_lea.hbm %s3, %s2996
          %s2999 = sshll.u32 %s2986, 4
          %s3000 = int_to_ptr.vmem [resolvable:$true] %s2999
          %3002 = dma.vmem_to_hbm [thread:$0]  %s3000, 256, %s2997, %s2983
        $region36: #{tpu_custom_call.1} parent=31 // pred_fallthru
          _
      $region32: #{tpu_custom_call.1} parent=5 // pred_fallthru
        _
      %p3003 = scmp.le.s32.totalorder 2, %s12
      // Predicated region
      $region37: #{tpu_custom_call.1} parent=5 // pred_check
        %p3004 = pneg %p3003
      $region38: #{tpu_custom_call.1} parent=5 // pred_check_branch
        %3006 = sbr.rel (%p3004) target = $region40
      $region39: #{tpu_custom_call.1} parent=5 // pred_region
        %s3007 = ssub.s32 %s12, 2
        // Predicated region
        $region41: #{tpu_custom_call.1} parent=39 // pred_check
          %p3008 = pneg %p123
        $region42: #{tpu_custom_call.1} parent=39 // pred_check_branch
          %3010 = sbr.rel (%p3008) target = $region44
        $region43: #{tpu_custom_call.1} parent=39 // pred_region
          %s3011 = sand.u32 %s108, 1
          %s3012 = scalar_lea.sflag [#allocation4], %s3011
          %s3013 = sand.u32 %s108, 1
          %s3014 = smul.addr %s3013, 16
          %s3015 = scalar_lea.vmem [#allocation3], %s3014
          %3016 = dma.done %s3012, 256
        $region44: #{tpu_custom_call.1} parent=39 // pred_fallthru
          _
      $region40: #{tpu_custom_call.1} parent=5 // pred_fallthru
        _
    $region6: #{tpu_custom_call.1} parent=1 // loop_footer
      %s16 = sadd.s32 1, %s12
    $region7: #{tpu_custom_call.1} parent=1 // loop_footer_branch
      %11 = sbr.rel target = $region3
    $region8: #{tpu_custom_call.1} parent=1 // loop_exit
      _
    %3017 = vsyncpa [#allocation4], 1
    %s3018 = scalar_lea.sflag [#allocation4], 1
    %3019 = vsyncpa %s3018, 1

</llo_original>
